<compile_context>
chip_gen: v5e
topology: v5e:2x2
jax: 0.10.0
libtpu: 0.0.40
codegen_flags: <defaults>
</compile_context>

<pallas_src>
import numpy as np
from functools import partial

import jax
import jax.numpy as jnp
from jax import lax
from jax.experimental import pallas as pl
from jax.experimental.pallas import tpu as pltpu

BN_EPS = 1e-5


def _fused_kernel(x_ref, w1_ref, w2s_ref, bias_ref, gamma_ref, beta_ref,
                  fold_ref, unfold_ref, out_ref,
                  y1_scr, stats_scr, xpad_scr, ypad_scr, pat1_scr, pat2_scr,
                  *, N, H, W, Cin, Cout):
    # grid = (phase, batch image): phase 0 = conv1 + BN stats,
    #                              phase 1 = BN + ReLU + conv2 + skip + ReLU.
    phase = pl.program_id(0)
    n = pl.program_id(1)
    WCin, WCout = W * Cin, W * Cout

    # One-time init: zero the pad halos and the stats accumulator.  Scratch
    # persists across grid steps and the interiors are fully rewritten every
    # step, so no per-step re-zeroing.
    @pl.when(jnp.logical_and(phase == 0, n == 0))
    def _init():
        xpad_scr[...] = jnp.zeros_like(xpad_scr)
        ypad_scr[...] = jnp.zeros_like(ypad_scr)
        stats_scr[...] = jnp.zeros_like(stats_scr)

    # ---------------- phase 0: conv1 (bias dropped) + BN batch stats --------
    @pl.when(phase == 0)
    def _phase0():
        # Interior write of the zero-padded input, lane-flat (H+2, (W+2)*Cin).
        xpad_scr[1:H + 1, Cin:Cin + WCin] = x_ref[0]
        # im2col in the lane-flat layout: every tap is a contiguous column slab.
        for t in range(9):
            kh, kw = t // 3, t % 3
            pat1_scr[:, t * WCin:(t + 1) * WCin] = (
                xpad_scr[kh:kh + H, kw * Cin:kw * Cin + WCin]
            ).astype(jnp.bfloat16)
        # conv1 == one MXU matmul against the (9*W*Cin, W*Cout) block-diagonal
        # weights.  Bias omitted: it cancels exactly under training-mode BN.
        y = jnp.dot(pat1_scr[...], w1_ref[...],
                    preferred_element_type=jnp.float32)          # (H, W*Cout) f32
        y1_scr[n] = y                                            # stays in VMEM

        # One-pass batch statistics, folded to per-channel via a tiny matmul
        # (avoids lane<->sublane reshapes), accumulated across images.
        ssum = jnp.sum(y, axis=0, keepdims=True)                 # (1, W*Cout)
        ssq = jnp.sum(y * y, axis=0, keepdims=True)              # (1, W*Cout)
        flat = jnp.concatenate([ssum, ssq], axis=0)              # (2, W*Cout)
        stats_scr[...] += jnp.dot(flat, fold_ref[...],
                                  preferred_element_type=jnp.float32)   # (2, Cout)

    # -------- phase 1: BN + ReLU + conv2 + fused 1x1 skip + residual ReLU ---
    @pl.when(phase == 1)
    def _phase1():
        m = jnp.float32(N * H * W)
        mean = stats_scr[0:1, :] / m                             # (1, Cout)
        var = stats_scr[1:2, :] / m - mean * mean                # biased variance
        scale_c = gamma_ref[...] * lax.rsqrt(var + BN_EPS)       # (1, Cout)
        shift_c = beta_ref[...] - mean * scale_c
        # Broadcast per-channel scale/shift back to the lane-flat (w, c) axis
        # via another tiny matmul (the transpose of the fold matrix).
        sc_sh = jnp.dot(jnp.concatenate([scale_c, shift_c], axis=0),
                        unfold_ref[...],
                        preferred_element_type=jnp.float32)      # (2, W*Cout)

        ybn = jnp.maximum(y1_scr[n] * sc_sh[0:1, :] + sc_sh[1:2, :], 0.0)
        ypad_scr[1:H + 1, Cout:Cout + WCout] = ybn
        for t in range(9):
            kh, kw = t // 3, t % 3
            pat2_scr[:, t * WCout:(t + 1) * WCout] = (
                ypad_scr[kh:kh + H, kw * Cout:kw * Cout + WCout]
            ).astype(jnp.bfloat16)
        # The 1x1 skip conv is fused into the same matmul: x occupies the
        # trailing K columns (and ws the trailing weight rows).
        pat2_scr[:, 9 * WCout:] = x_ref[0].astype(jnp.bfloat16)

        acc = jnp.dot(pat2_scr[...], w2s_ref[...],
                      preferred_element_type=jnp.float32)        # (H, W*Cout)
        out_ref[0] = jnp.maximum(acc + bias_ref[...], 0.0)


def _block_diag_weights(w_taps, W):
    """w_taps: (T, Ci, Co) per-tap weights -> (T*W*Ci, W*Co) block-diagonal
    weights so the conv is a single matmul in the lane-flat (H, W*C) layout."""
    T, Ci, Co = w_taps.shape
    eye = jnp.eye(W, dtype=w_taps.dtype)
    return jnp.einsum("tio,wv->twivo", w_taps, eye).reshape(T * W * Ci, W * Co)


def doubleconv1_forward(x_nchw, params):
    """x_nchw: (N, Cin, H, W) float32 -> (N, Cout, H, W) float32."""
    N, Cin, H, W = x_nchw.shape
    Cout = params["w1"].shape[-1]
    WCin, WCout = W * Cin, W * Cout

    # Lane-dense activation layout: (N, H, W*C).
    x = jnp.transpose(x_nchw, (0, 2, 3, 1)).reshape(N, H, WCin)

    # W-folded block-diagonal weights (built once, resident in VMEM).  The
    # 1x1 skip weights are appended to conv2's contraction dim; its bias is
    # merged with conv2's bias.  MXU operands are bf16, accumulation f32.
    w1_big = _block_diag_weights(params["w1"].reshape(9, Cin, Cout), W)
    w2_big = _block_diag_weights(params["w2"].reshape(9, Cout, Cout), W)
    ws_big = _block_diag_weights(params["ws"][None], W)            # (W*Cin, W*Cout)
    w1_big = w1_big.astype(jnp.bfloat16)
    w2s_big = jnp.concatenate([w2_big, ws_big], axis=0).astype(jnp.bfloat16)

    bias_flat = jnp.tile(params["b2"] + params["bs"], (1, W))      # (1, W*Cout)
    # Per-channel fold/unfold matrices for BN statistics in the flat layout.
    fold = jnp.tile(jnp.eye(Cout, dtype=jnp.float32), (W, 1))      # (W*Cout, Cout)
    unfold = fold.T                                                # (Cout, W*Cout)

    kernel = partial(_fused_kernel, N=N, H=H, W=W, Cin=Cin, Cout=Cout)
    out = pl.pallas_call(
        kernel,
        grid=(2, N),   # phase-major: all conv1+stats steps, then all BN+conv2 steps
        out_shape=jax.ShapeDtypeStruct((N, H, WCout), jnp.float32),
        in_specs=[
            pl.BlockSpec((1, H, WCin), lambda p, n: (n, 0, 0)),           # x
            pl.BlockSpec((9 * WCin, WCout), lambda p, n: (0, 0)),         # conv1 W
            pl.BlockSpec((9 * WCout + WCin, WCout), lambda p, n: (0, 0)), # conv2+skip W
            pl.BlockSpec((1, WCout), lambda p, n: (0, 0)),                # b2+bs (flat)
            pl.BlockSpec((1, Cout), lambda p, n: (0, 0)),                 # gamma
            pl.BlockSpec((1, Cout), lambda p, n: (0, 0)),                 # beta
            pl.BlockSpec((WCout, Cout), lambda p, n: (0, 0)),             # fold
            pl.BlockSpec((Cout, WCout), lambda p, n: (0, 0)),             # unfold
        ],
        # Phase 0 never writes the output; its block index is pinned at 0 so
        # nothing is flushed before phase 1 writes each image's block once.
        out_specs=pl.BlockSpec((1, H, WCout), lambda p, n: (p * n, 0, 0)),
        scratch_shapes=[
            pltpu.VMEM((N, H, WCout), jnp.float32),             # y1 kept on-chip
            pltpu.VMEM((2, Cout), jnp.float32),                 # [sum; sumsq]
            pltpu.VMEM((H + 2, (W + 2) * Cin), jnp.float32),    # zero-padded x
            pltpu.VMEM((H + 2, (W + 2) * Cout), jnp.float32),   # zero-padded BN(ReLU(y1))
            pltpu.VMEM((H, 9 * WCin), jnp.bfloat16),            # conv1 im2col
            pltpu.VMEM((H, 9 * WCout + WCin), jnp.bfloat16),    # conv2 + skip im2col
        ],
        compiler_params=pltpu.CompilerParams(
            # BN stats accumulate across batch steps and feed phase 1, so both
            # grid axes are sequential.
            dimension_semantics=("arbitrary", "arbitrary"),
            vmem_limit_bytes=8 * 1024 * 1024,
        ),
    )(x, w1_big, w2s_big, bias_flat, params["gamma"], params["beta"],
      fold, unfold)

    return jnp.transpose(out.reshape(N, H, W, Cout), (0, 3, 1, 2))


def _reference_forward(x_nchw, params):
    """Pure-JAX reference.  Operands are rounded to bf16 (the MXU operand
    precision) with f32 accumulation, so the check isolates the kernel's
    decomposition rather than the agreed precision choice.  conv1's bias is
    kept here; it cancels exactly under training-mode BN (the kernel drops it)."""
    rb = lambda a: a.astype(jnp.bfloat16).astype(jnp.float32)
    x = jnp.transpose(x_nchw, (0, 2, 3, 1))
    dn = ("NHWC", "HWIO", "NHWC")
    conv = lambda inp, w: lax.conv_general_dilated(
        rb(inp), rb(w), (1, 1), "SAME", dimension_numbers=dn,
        precision=lax.Precision.HIGHEST)

    y = conv(x, params["w1"]) + params["b1"]
    mean = jnp.mean(y, axis=(0, 1, 2), keepdims=True)
    var = jnp.mean((y - mean) ** 2, axis=(0, 1, 2), keepdims=True)
    y = (y - mean) * (params["gamma"] * lax.rsqrt(var + BN_EPS)) + params["beta"]
    y = jnp.maximum(y, 0.0)
    y = conv(y, params["w2"]) + params["b2"]

    skip = conv(x, params["ws"][None, None, :, :]) + params["bs"]
    out = jnp.maximum(y + skip, 0.0)
    return jnp.transpose(out, (0, 3, 1, 2))


def make_params(key, in_ch, out_ch):
    ks = jax.random.split(key, 8)
    s = 0.1
    return {
        "w1": s * jax.random.normal(ks[0], (3, 3, in_ch, out_ch), jnp.float32),
        "b1": s * jax.random.normal(ks[1], (1, out_ch), jnp.float32),
        "gamma": 1.0 + s * jax.random.normal(ks[2], (1, out_ch), jnp.float32),
        "beta": s * jax.random.normal(ks[3], (1, out_ch), jnp.float32),
        "w2": s * jax.random.normal(ks[4], (3, 3, out_ch, out_ch), jnp.float32),
        "b2": s * jax.random.normal(ks[5], (1, out_ch), jnp.float32),
        "ws": s * jax.random.normal(ks[6], (in_ch, out_ch), jnp.float32),
        "bs": s * jax.random.normal(ks[7], (1, out_ch), jnp.float32),
    }


if __name__ == "__main__":
    key = jax.random.PRNGKey(0)
    kx, kp = jax.random.split(key)

    N, Cin, Cout, H, W = 2, 4, 8, 16, 16
    x = jax.random.normal(kx, (N, Cin, H, W), jnp.float32)
    params = make_params(kp, Cin, Cout)

    out = jax.block_until_ready(doubleconv1_forward(x, params))
    ref = jax.block_until_ready(_reference_forward(x, params))

    assert out.shape == (N, Cout, H, W)
    np.testing.assert_allclose(np.asarray(out), np.asarray(ref),
                               atol=1e-2, rtol=1e-2)
    print("KERNEL_OK")
</pallas_src>

<mosaic_0001>
module attributes {stable_mosaic.version = 11 : i64} {
  func.func @_fused_kernel(%arg0: i32, %arg1: i32, %arg2: memref<1x16x64xf32, #tpu.memory_space<vmem>>, %arg3: memref<576x128xbf16, #tpu.memory_space<vmem>>, %arg4: memref<1216x128xbf16, #tpu.memory_space<vmem>>, %arg5: memref<1x128xf32, #tpu.memory_space<vmem>>, %arg6: memref<1x8xf32, #tpu.memory_space<vmem>>, %arg7: memref<1x8xf32, #tpu.memory_space<vmem>>, %arg8: memref<128x8xf32, #tpu.memory_space<vmem>>, %arg9: memref<8x128xf32, #tpu.memory_space<vmem>>, %arg10: memref<1x16x128xf32, #tpu.memory_space<vmem>>, %arg11: memref<2x16x128xf32, #tpu.memory_space<vmem>>, %arg12: memref<2x8xf32, #tpu.memory_space<vmem>>, %arg13: memref<18x72xf32, #tpu.memory_space<vmem>>, %arg14: memref<18x144xf32, #tpu.memory_space<vmem>>, %arg15: memref<16x576xbf16, #tpu.memory_space<vmem>>, %arg16: memref<16x1216xbf16, #tpu.memory_space<vmem>>) attributes {dimension_semantics = [#tpu.dimension_semantics<arbitrary>, #tpu.dimension_semantics<arbitrary>], iteration_bounds = array<i64: 2, 2>, scalar_prefetch = 0 : i64, scratch_operands = 6 : i64, tpu.core_type = #tpu.core_type<tc>, window_params = [{transform_indices = @transform_0, window_bounds = array<i64: 1, 16, 64>}, {pipeline_mode = #tpu.pipeline_mode<synchronous>, transform_indices = @transform_1, window_bounds = array<i64: 576, 128>}, {pipeline_mode = #tpu.pipeline_mode<synchronous>, transform_indices = @transform_2, window_bounds = array<i64: 1216, 128>}, {pipeline_mode = #tpu.pipeline_mode<synchronous>, transform_indices = @transform_3, window_bounds = array<i64: 1, 128>}, {pipeline_mode = #tpu.pipeline_mode<synchronous>, transform_indices = @transform_4, window_bounds = array<i64: 1, 8>}, {pipeline_mode = #tpu.pipeline_mode<synchronous>, transform_indices = @transform_5, window_bounds = array<i64: 1, 8>}, {pipeline_mode = #tpu.pipeline_mode<synchronous>, transform_indices = @transform_6, window_bounds = array<i64: 128, 8>}, {pipeline_mode = #tpu.pipeline_mode<synchronous>, transform_indices = @transform_7, window_bounds = array<i64: 8, 128>}, {transform_indices = @transform_8, window_bounds = array<i64: 1, 16, 128>}]} {
    %c0_i32 = arith.constant 0 : i32
    %0 = arith.cmpi eq, %arg0, %c0_i32 : i32
    %c0_i32_0 = arith.constant 0 : i32
    %1 = arith.cmpi eq, %arg1, %c0_i32_0 : i32
    %2 = arith.andi %0, %1 : i1
    %3 = arith.extui %2 : i1 to i32
    %c0_i32_1 = arith.constant 0 : i32
    %4 = arith.cmpi ne, %3, %c0_i32_1 : i32
    scf.if %4 {
      %cst = arith.constant 0.000000e+00 : f32
      %11 = vector.broadcast %cst : f32 to vector<18x72xf32>
      %c0 = arith.constant 0 : index
      %c0_5 = arith.constant 0 : index
      %12 = vector.load %arg13[%c0, %c0_5] : memref<18x72xf32, #tpu.memory_space<vmem>>, vector<18x72xf32>
      tpu.vector_store %arg13[%c0, %c0_5], %11 {strides = array<i32>} : memref<18x72xf32, #tpu.memory_space<vmem>>, vector<18x72xf32>,
      %cst_6 = arith.constant 0.000000e+00 : f32
      %13 = vector.broadcast %cst_6 : f32 to vector<18x144xf32>
      %c0_7 = arith.constant 0 : index
      %c0_8 = arith.constant 0 : index
      %14 = vector.load %arg14[%c0_7, %c0_8] : memref<18x144xf32, #tpu.memory_space<vmem>>, vector<18x144xf32>
      tpu.vector_store %arg14[%c0_7, %c0_8], %13 {strides = array<i32>} : memref<18x144xf32, #tpu.memory_space<vmem>>, vector<18x144xf32>,
      %cst_9 = arith.constant 0.000000e+00 : f32
      %15 = vector.broadcast %cst_9 : f32 to vector<2x8xf32>
      %c0_10 = arith.constant 0 : index
      %c0_11 = arith.constant 0 : index
      %16 = vector.load %arg12[%c0_10, %c0_11] : memref<2x8xf32, #tpu.memory_space<vmem>>, vector<2x8xf32>
      tpu.vector_store %arg12[%c0_10, %c0_11], %15 {strides = array<i32>} : memref<2x8xf32, #tpu.memory_space<vmem>>, vector<2x8xf32>,
    } else {
    }
    %c0_i32_2 = arith.constant 0 : i32
    %5 = arith.cmpi eq, %arg0, %c0_i32_2 : i32
    %6 = arith.extui %5 : i1 to i32
    %c0_i32_3 = arith.constant 0 : i32
    %7 = arith.cmpi ne, %6, %c0_i32_3 : i32
    scf.if %7 {
      %c0 = arith.constant 0 : index
      %c0_5 = arith.constant 0 : index
      %c0_6 = arith.constant 0 : index
      %11 = vector.load %arg2[%c0, %c0_5, %c0_6] : memref<1x16x64xf32, #tpu.memory_space<vmem>>, vector<1x16x64xf32>
      %12 = vector.shape_cast %11 : vector<1x16x64xf32> to vector<16x64xf32>
      %c1 = arith.constant 1 : index
      %c4 = arith.constant 4 : index
      %13 = vector.load %arg13[%c1, %c4] : memref<18x72xf32, #tpu.memory_space<vmem>>, vector<16x64xf32>
      tpu.vector_store %arg13[%c1, %c4], %12 {strides = array<i32>} : memref<18x72xf32, #tpu.memory_space<vmem>>, vector<16x64xf32>,
      %c0_7 = arith.constant 0 : index
      %c0_8 = arith.constant 0 : index
      %14 = vector.load %arg13[%c0_7, %c0_8] : memref<18x72xf32, #tpu.memory_space<vmem>>, vector<16x64xf32>
      %15 = arith.truncf %14 : vector<16x64xf32> to vector<16x64xbf16>
      %c0_9 = arith.constant 0 : index
      %c0_10 = arith.constant 0 : index
      %16 = vector.load %arg15[%c0_9, %c0_10] : memref<16x576xbf16, #tpu.memory_space<vmem>>, vector<16x64xbf16>
      tpu.vector_store %arg15[%c0_9, %c0_10], %15 {strides = array<i32>} : memref<16x576xbf16, #tpu.memory_space<vmem>>, vector<16x64xbf16>,
      %c0_11 = arith.constant 0 : index
      %c4_12 = arith.constant 4 : index
      %17 = vector.load %arg13[%c0_11, %c4_12] : memref<18x72xf32, #tpu.memory_space<vmem>>, vector<16x64xf32>
      %18 = arith.truncf %17 : vector<16x64xf32> to vector<16x64xbf16>
      %c0_13 = arith.constant 0 : index
      %c64 = arith.constant 64 : index
      %19 = vector.load %arg15[%c0_13, %c64] : memref<16x576xbf16, #tpu.memory_space<vmem>>, vector<16x64xbf16>
      tpu.vector_store %arg15[%c0_13, %c64], %18 {strides = array<i32>} : memref<16x576xbf16, #tpu.memory_space<vmem>>, vector<16x64xbf16>,
      %c0_14 = arith.constant 0 : index
      %c8 = arith.constant 8 : index
      %20 = vector.load %arg13[%c0_14, %c8] : memref<18x72xf32, #tpu.memory_space<vmem>>, vector<16x64xf32>
      %21 = arith.truncf %20 : vector<16x64xf32> to vector<16x64xbf16>
      %c0_15 = arith.constant 0 : index
      %c128 = arith.constant 128 : index
      %22 = vector.load %arg15[%c0_15, %c128] : memref<16x576xbf16, #tpu.memory_space<vmem>>, vector<16x64xbf16>
      tpu.vector_store %arg15[%c0_15, %c128], %21 {strides = array<i32>} : memref<16x576xbf16, #tpu.memory_space<vmem>>, vector<16x64xbf16>,
      %c1_16 = arith.constant 1 : index
      %c0_17 = arith.constant 0 : index
      %23 = vector.load %arg13[%c1_16, %c0_17] : memref<18x72xf32, #tpu.memory_space<vmem>>, vector<16x64xf32>
      %24 = arith.truncf %23 : vector<16x64xf32> to vector<16x64xbf16>
      %c0_18 = arith.constant 0 : index
      %c192 = arith.constant 192 : index
      %25 = vector.load %arg15[%c0_18, %c192] : memref<16x576xbf16, #tpu.memory_space<vmem>>, vector<16x64xbf16>
      tpu.vector_store %arg15[%c0_18, %c192], %24 {strides = array<i32>} : memref<16x576xbf16, #tpu.memory_space<vmem>>, vector<16x64xbf16>,
      %c1_19 = arith.constant 1 : index
      %c4_20 = arith.constant 4 : index
      %26 = vector.load %arg13[%c1_19, %c4_20] : memref<18x72xf32, #tpu.memory_space<vmem>>, vector<16x64xf32>
      %27 = arith.truncf %26 : vector<16x64xf32> to vector<16x64xbf16>
      %c0_21 = arith.constant 0 : index
      %c256 = arith.constant 256 : index
      %28 = vector.load %arg15[%c0_21, %c256] : memref<16x576xbf16, #tpu.memory_space<vmem>>, vector<16x64xbf16>
      tpu.vector_store %arg15[%c0_21, %c256], %27 {strides = array<i32>} : memref<16x576xbf16, #tpu.memory_space<vmem>>, vector<16x64xbf16>,
      %c1_22 = arith.constant 1 : index
      %c8_23 = arith.constant 8 : index
      %29 = vector.load %arg13[%c1_22, %c8_23] : memref<18x72xf32, #tpu.memory_space<vmem>>, vector<16x64xf32>
      %30 = arith.truncf %29 : vector<16x64xf32> to vector<16x64xbf16>
      %c0_24 = arith.constant 0 : index
      %c320 = arith.constant 320 : index
      %31 = vector.load %arg15[%c0_24, %c320] : memref<16x576xbf16, #tpu.memory_space<vmem>>, vector<16x64xbf16>
      tpu.vector_store %arg15[%c0_24, %c320], %30 {strides = array<i32>} : memref<16x576xbf16, #tpu.memory_space<vmem>>, vector<16x64xbf16>,
      %c2 = arith.constant 2 : index
      %c0_25 = arith.constant 0 : index
      %32 = vector.load %arg13[%c2, %c0_25] : memref<18x72xf32, #tpu.memory_space<vmem>>, vector<16x64xf32>
      %33 = arith.truncf %32 : vector<16x64xf32> to vector<16x64xbf16>
      %c0_26 = arith.constant 0 : index
      %c384 = arith.constant 384 : index
      %34 = vector.load %arg15[%c0_26, %c384] : memref<16x576xbf16, #tpu.memory_space<vmem>>, vector<16x64xbf16>
      tpu.vector_store %arg15[%c0_26, %c384], %33 {strides = array<i32>} : memref<16x576xbf16, #tpu.memory_space<vmem>>, vector<16x64xbf16>,
      %c2_27 = arith.constant 2 : index
      %c4_28 = arith.constant 4 : index
      %35 = vector.load %arg13[%c2_27, %c4_28] : memref<18x72xf32, #tpu.memory_space<vmem>>, vector<16x64xf32>
      %36 = arith.truncf %35 : vector<16x64xf32> to vector<16x64xbf16>
      %c0_29 = arith.constant 0 : index
      %c448 = arith.constant 448 : index
      %37 = vector.load %arg15[%c0_29, %c448] : memref<16x576xbf16, #tpu.memory_space<vmem>>, vector<16x64xbf16>
      tpu.vector_store %arg15[%c0_29, %c448], %36 {strides = array<i32>} : memref<16x576xbf16, #tpu.memory_space<vmem>>, vector<16x64xbf16>,
      %c2_30 = arith.constant 2 : index
      %c8_31 = arith.constant 8 : index
      %38 = vector.load %arg13[%c2_30, %c8_31] : memref<18x72xf32, #tpu.memory_space<vmem>>, vector<16x64xf32>
      %39 = arith.truncf %38 : vector<16x64xf32> to vector<16x64xbf16>
      %c0_32 = arith.constant 0 : index
      %c512 = arith.constant 512 : index
      %40 = vector.load %arg15[%c0_32, %c512] : memref<16x576xbf16, #tpu.memory_space<vmem>>, vector<16x64xbf16>
      tpu.vector_store %arg15[%c0_32, %c512], %39 {strides = array<i32>} : memref<16x576xbf16, #tpu.memory_space<vmem>>, vector<16x64xbf16>,
      %c0_33 = arith.constant 0 : index
      %c0_34 = arith.constant 0 : index
      %41 = vector.load %arg15[%c0_33, %c0_34] : memref<16x576xbf16, #tpu.memory_space<vmem>>, vector<16x576xbf16>
      %c0_35 = arith.constant 0 : index
      %c0_36 = arith.constant 0 : index
      %42 = vector.load %arg3[%c0_35, %c0_36] : memref<576x128xbf16, #tpu.memory_space<vmem>>, vector<576x128xbf16>
      %cst = arith.constant dense<0.000000e+00> : vector<16x128xf32>
      %43 = tpu.matmul %41, %42, %cst {dimension_numbers = #tpu.dot_dimension_numbers<[1], [0], [0], [1], [0, 0, 1, 1], [], []>} : vector<16x576xbf16>, vector<576x128xbf16>, vector<16x128xf32> -> vector<16x128xf32>
      %44 = arith.index_cast %arg1 : i32 to index
      %c0_37 = arith.constant 0 : index
      %c0_38 = arith.constant 0 : index
      %45 = vector.load %arg11[%44, %c0_37, %c0_38] : memref<2x16x128xf32, #tpu.memory_space<vmem>>, vector<1x16x128xf32>
      %46 = vector.shape_cast %45 : vector<1x16x128xf32> to vector<16x128xf32>
      %47 = vector.shape_cast %43 : vector<16x128xf32> to vector<1x16x128xf32>
      tpu.vector_store %arg11[%44, %c0_37, %c0_38], %47 {strides = array<i32>} : memref<2x16x128xf32, #tpu.memory_space<vmem>>, vector<1x16x128xf32>,
      %cst_39 = arith.constant dense<0.000000e+00> : vector<128xf32>
      %48 = vector.multi_reduction <add>, %43, %cst_39 [0] : vector<16x128xf32> to vector<128xf32>
      %49 = vector.shape_cast %48 : vector<128xf32> to vector<1x128xf32>
      %50 = arith.mulf %43, %43 : vector<16x128xf32>
      %cst_40 = arith.constant dense<0.000000e+00> : vector<128xf32>
      %51 = vector.multi_reduction <add>, %50, %cst_40 [0] : vector<16x128xf32> to vector<128xf32>
      %52 = vector.shape_cast %51 : vector<128xf32> to vector<1x128xf32>
      %53 = tpu.concatenate %49, %52 in 0 : vector<1x128xf32>, vector<1x128xf32> -> vector<2x128xf32>
      %c0_41 = arith.constant 0 : index
      %c0_42 = arith.constant 0 : index
      %54 = vector.load %arg12[%c0_41, %c0_42] : memref<2x8xf32, #tpu.memory_space<vmem>>, vector<2x8xf32>
      %c0_43 = arith.constant 0 : index
      %c0_44 = arith.constant 0 : index
      %55 = vector.load %arg8[%c0_43, %c0_44] : memref<128x8xf32, #tpu.memory_space<vmem>>, vector<128x8xf32>
      %cst_45 = arith.constant dense<0.000000e+00> : vector<2x8xf32>
      %56 = tpu.matmul %53, %55, %cst_45 {dimension_numbers = #tpu.dot_dimension_numbers<[1], [0], [0], [1], [0, 0, 1, 1], [], []>} : vector<2x128xf32>, vector<128x8xf32>, vector<2x8xf32> -> vector<2x8xf32>
      %57 = arith.addf %54, %56 : vector<2x8xf32>
      %c0_46 = arith.constant 0 : index
      %c0_47 = arith.constant 0 : index
      %58 = vector.load %arg12[%c0_46, %c0_47] : memref<2x8xf32, #tpu.memory_space<vmem>>, vector<2x8xf32>
      tpu.vector_store %arg12[%c0_46, %c0_47], %57 {strides = array<i32>} : memref<2x8xf32, #tpu.memory_space<vmem>>, vector<2x8xf32>,
    } else {
    }
    %c1_i32 = arith.constant 1 : i32
    %8 = arith.cmpi eq, %arg0, %c1_i32 : i32
    %9 = arith.extui %8 : i1 to i32
    %c0_i32_4 = arith.constant 0 : i32
    %10 = arith.cmpi ne, %9, %c0_i32_4 : i32
    scf.if %10 {
      %c0 = arith.constant 0 : index
      %c0_5 = arith.constant 0 : index
      %11 = vector.load %arg12[%c0, %c0_5] : memref<2x8xf32, #tpu.memory_space<vmem>>, vector<1x8xf32>
      %cst = arith.constant 5.120000e+02 : f32
      %12 = vector.broadcast %cst : f32 to vector<1x8xf32>
      %13 = arith.divf %11, %12 : vector<1x8xf32>
      %c1 = arith.constant 1 : index
      %c0_6 = arith.constant 0 : index
      %14 = vector.load %arg12[%c1, %c0_6] : memref<2x8xf32, #tpu.memory_space<vmem>>, vector<1x8xf32>
      %cst_7 = arith.constant 5.120000e+02 : f32
      %15 = vector.broadcast %cst_7 : f32 to vector<1x8xf32>
      %16 = arith.divf %14, %15 : vector<1x8xf32>
      %17 = arith.mulf %13, %13 : vector<1x8xf32>
      %18 = arith.subf %16, %17 : vector<1x8xf32>
      %c0_8 = arith.constant 0 : index
      %c0_9 = arith.constant 0 : index
      %19 = vector.load %arg6[%c0_8, %c0_9] : memref<1x8xf32, #tpu.memory_space<vmem>>, vector<1x8xf32>
      %cst_10 = arith.constant 9.99999974E-6 : f32
      %20 = vector.broadcast %cst_10 : f32 to vector<1x8xf32>
      %21 = arith.addf %18, %20 : vector<1x8xf32>
      %22 = math.rsqrt %21 : vector<1x8xf32>
      %23 = arith.mulf %19, %22 : vector<1x8xf32>
      %c0_11 = arith.constant 0 : index
      %c0_12 = arith.constant 0 : index
      %24 = vector.load %arg7[%c0_11, %c0_12] : memref<1x8xf32, #tpu.memory_space<vmem>>, vector<1x8xf32>
      %25 = arith.mulf %13, %23 : vector<1x8xf32>
      %26 = arith.subf %24, %25 : vector<1x8xf32>
      %27 = tpu.concatenate %23, %26 in 0 : vector<1x8xf32>, vector<1x8xf32> -> vector<2x8xf32>
      %c0_13 = arith.constant 0 : index
      %c0_14 = arith.constant 0 : index
      %28 = vector.load %arg9[%c0_13, %c0_14] : memref<8x128xf32, #tpu.memory_space<vmem>>, vector<8x128xf32>
      %cst_15 = arith.constant dense<0.000000e+00> : vector<2x128xf32>
      %29 = tpu.matmul %27, %28, %cst_15 {dimension_numbers = #tpu.dot_dimension_numbers<[1], [0], [0], [1], [0, 0, 1, 1], [], []>} : vector<2x8xf32>, vector<8x128xf32>, vector<2x128xf32> -> vector<2x128xf32>
      %30 = arith.index_cast %arg1 : i32 to index
      %c0_16 = arith.constant 0 : index
      %c0_17 = arith.constant 0 : index
      %31 = vector.load %arg11[%30, %c0_16, %c0_17] : memref<2x16x128xf32, #tpu.memory_space<vmem>>, vector<1x16x128xf32>
      %32 = vector.shape_cast %31 : vector<1x16x128xf32> to vector<16x128xf32>
      %33 = vector.extract_strided_slice %29 {offsets = [0, 0], sizes = [1, 128], strides = [1, 1]} : vector<2x128xf32> to vector<1x128xf32>
      %34 = vector.broadcast %33 : vector<1x128xf32> to vector<16x128xf32>
      %35 = arith.mulf %32, %34 : vector<16x128xf32>
      %36 = vector.extract_strided_slice %29 {offsets = [1, 0], sizes = [1, 128], strides = [1, 1]} : vector<2x128xf32> to vector<1x128xf32>
      %37 = vector.broadcast %36 : vector<1x128xf32> to vector<16x128xf32>
      %38 = arith.addf %35, %37 : vector<16x128xf32>
      %cst_18 = arith.constant 0.000000e+00 : f32
      %39 = vector.broadcast %cst_18 : f32 to vector<16x128xf32>
      %40 = arith.maximumf %38, %39 : vector<16x128xf32>
      %c1_19 = arith.constant 1 : index
      %c8 = arith.constant 8 : index
      %41 = vector.load %arg14[%c1_19, %c8] : memref<18x144xf32, #tpu.memory_space<vmem>>, vector<16x128xf32>
      tpu.vector_store %arg14[%c1_19, %c8], %40 {strides = array<i32>} : memref<18x144xf32, #tpu.memory_space<vmem>>, vector<16x128xf32>,
      %c0_20 = arith.constant 0 : index
      %c0_21 = arith.constant 0 : index
      %42 = vector.load %arg14[%c0_20, %c0_21] : memref<18x144xf32, #tpu.memory_space<vmem>>, vector<16x128xf32>
      %43 = arith.truncf %42 : vector<16x128xf32> to vector<16x128xbf16>
      %c0_22 = arith.constant 0 : index
      %c0_23 = arith.constant 0 : index
      %44 = vector.load %arg16[%c0_22, %c0_23] : memref<16x1216xbf16, #tpu.memory_space<vmem>>, vector<16x128xbf16>
      tpu.vector_store %arg16[%c0_22, %c0_23], %43 {strides = array<i32>} : memref<16x1216xbf16, #tpu.memory_space<vmem>>, vector<16x128xbf16>,
      %c0_24 = arith.constant 0 : index
      %c8_25 = arith.constant 8 : index
      %45 = vector.load %arg14[%c0_24, %c8_25] : memref<18x144xf32, #tpu.memory_space<vmem>>, vector<16x128xf32>
      %46 = arith.truncf %45 : vector<16x128xf32> to vector<16x128xbf16>
      %c0_26 = arith.constant 0 : index
      %c128 = arith.constant 128 : index
      %47 = vector.load %arg16[%c0_26, %c128] : memref<16x1216xbf16, #tpu.memory_space<vmem>>, vector<16x128xbf16>
      tpu.vector_store %arg16[%c0_26, %c128], %46 {strides = array<i32>} : memref<16x1216xbf16, #tpu.memory_space<vmem>>, vector<16x128xbf16>,
      %c0_27 = arith.constant 0 : index
      %c16 = arith.constant 16 : index
      %48 = vector.load %arg14[%c0_27, %c16] : memref<18x144xf32, #tpu.memory_space<vmem>>, vector<16x128xf32>
      %49 = arith.truncf %48 : vector<16x128xf32> to vector<16x128xbf16>
      %c0_28 = arith.constant 0 : index
      %c256 = arith.constant 256 : index
      %50 = vector.load %arg16[%c0_28, %c256] : memref<16x1216xbf16, #tpu.memory_space<vmem>>, vector<16x128xbf16>
      tpu.vector_store %arg16[%c0_28, %c256], %49 {strides = array<i32>} : memref<16x1216xbf16, #tpu.memory_space<vmem>>, vector<16x128xbf16>,
      %c1_29 = arith.constant 1 : index
      %c0_30 = arith.constant 0 : index
      %51 = vector.load %arg14[%c1_29, %c0_30] : memref<18x144xf32, #tpu.memory_space<vmem>>, vector<16x128xf32>
      %52 = arith.truncf %51 : vector<16x128xf32> to vector<16x128xbf16>
      %c0_31 = arith.constant 0 : index
      %c384 = arith.constant 384 : index
      %53 = vector.load %arg16[%c0_31, %c384] : memref<16x1216xbf16, #tpu.memory_space<vmem>>, vector<16x128xbf16>
      tpu.vector_store %arg16[%c0_31, %c384], %52 {strides = array<i32>} : memref<16x1216xbf16, #tpu.memory_space<vmem>>, vector<16x128xbf16>,
      %c1_32 = arith.constant 1 : index
      %c8_33 = arith.constant 8 : index
      %54 = vector.load %arg14[%c1_32, %c8_33] : memref<18x144xf32, #tpu.memory_space<vmem>>, vector<16x128xf32>
      %55 = arith.truncf %54 : vector<16x128xf32> to vector<16x128xbf16>
      %c0_34 = arith.constant 0 : index
      %c512 = arith.constant 512 : index
      %56 = vector.load %arg16[%c0_34, %c512] : memref<16x1216xbf16, #tpu.memory_space<vmem>>, vector<16x128xbf16>
      tpu.vector_store %arg16[%c0_34, %c512], %55 {strides = array<i32>} : memref<16x1216xbf16, #tpu.memory_space<vmem>>, vector<16x128xbf16>,
      %c1_35 = arith.constant 1 : index
      %c16_36 = arith.constant 16 : index
      %57 = vector.load %arg14[%c1_35, %c16_36] : memref<18x144xf32, #tpu.memory_space<vmem>>, vector<16x128xf32>
      %58 = arith.truncf %57 : vector<16x128xf32> to vector<16x128xbf16>
      %c0_37 = arith.constant 0 : index
      %c640 = arith.constant 640 : index
      %59 = vector.load %arg16[%c0_37, %c640] : memref<16x1216xbf16, #tpu.memory_space<vmem>>, vector<16x128xbf16>
      tpu.vector_store %arg16[%c0_37, %c640], %58 {strides = array<i32>} : memref<16x1216xbf16, #tpu.memory_space<vmem>>, vector<16x128xbf16>,
      %c2 = arith.constant 2 : index
      %c0_38 = arith.constant 0 : index
      %60 = vector.load %arg14[%c2, %c0_38] : memref<18x144xf32, #tpu.memory_space<vmem>>, vector<16x128xf32>
      %61 = arith.truncf %60 : vector<16x128xf32> to vector<16x128xbf16>
      %c0_39 = arith.constant 0 : index
      %c768 = arith.constant 768 : index
      %62 = vector.load %arg16[%c0_39, %c768] : memref<16x1216xbf16, #tpu.memory_space<vmem>>, vector<16x128xbf16>
      tpu.vector_store %arg16[%c0_39, %c768], %61 {strides = array<i32>} : memref<16x1216xbf16, #tpu.memory_space<vmem>>, vector<16x128xbf16>,
      %c2_40 = arith.constant 2 : index
      %c8_41 = arith.constant 8 : index
      %63 = vector.load %arg14[%c2_40, %c8_41] : memref<18x144xf32, #tpu.memory_space<vmem>>, vector<16x128xf32>
      %64 = arith.truncf %63 : vector<16x128xf32> to vector<16x128xbf16>
      %c0_42 = arith.constant 0 : index
      %c896 = arith.constant 896 : index
      %65 = vector.load %arg16[%c0_42, %c896] : memref<16x1216xbf16, #tpu.memory_space<vmem>>, vector<16x128xbf16>
      tpu.vector_store %arg16[%c0_42, %c896], %64 {strides = array<i32>} : memref<16x1216xbf16, #tpu.memory_space<vmem>>, vector<16x128xbf16>,
      %c2_43 = arith.constant 2 : index
      %c16_44 = arith.constant 16 : index
      %66 = vector.load %arg14[%c2_43, %c16_44] : memref<18x144xf32, #tpu.memory_space<vmem>>, vector<16x128xf32>
      %67 = arith.truncf %66 : vector<16x128xf32> to vector<16x128xbf16>
      %c0_45 = arith.constant 0 : index
      %c1024 = arith.constant 1024 : index
      %68 = vector.load %arg16[%c0_45, %c1024] : memref<16x1216xbf16, #tpu.memory_space<vmem>>, vector<16x128xbf16>
      tpu.vector_store %arg16[%c0_45, %c1024], %67 {strides = array<i32>} : memref<16x1216xbf16, #tpu.memory_space<vmem>>, vector<16x128xbf16>,
      %c0_46 = arith.constant 0 : index
      %c0_47 = arith.constant 0 : index
      %c0_48 = arith.constant 0 : index
      %69 = vector.load %arg2[%c0_46, %c0_47, %c0_48] : memref<1x16x64xf32, #tpu.memory_space<vmem>>, vector<1x16x64xf32>
      %70 = vector.shape_cast %69 : vector<1x16x64xf32> to vector<16x64xf32>
      %71 = arith.truncf %70 : vector<16x64xf32> to vector<16x64xbf16>
      %c0_49 = arith.constant 0 : index
      %c1152 = arith.constant 1152 : index
      %72 = vector.load %arg16[%c0_49, %c1152] : memref<16x1216xbf16, #tpu.memory_space<vmem>>, vector<16x64xbf16>
      tpu.vector_store %arg16[%c0_49, %c1152], %71 {strides = array<i32>} : memref<16x1216xbf16, #tpu.memory_space<vmem>>, vector<16x64xbf16>,
      %c0_50 = arith.constant 0 : index
      %c0_51 = arith.constant 0 : index
      %73 = vector.load %arg16[%c0_50, %c0_51] : memref<16x1216xbf16, #tpu.memory_space<vmem>>, vector<16x1216xbf16>
      %c0_52 = arith.constant 0 : index
      %c0_53 = arith.constant 0 : index
      %74 = vector.load %arg4[%c0_52, %c0_53] : memref<1216x128xbf16, #tpu.memory_space<vmem>>, vector<1216x128xbf16>
      %cst_54 = arith.constant dense<0.000000e+00> : vector<16x128xf32>
      %75 = tpu.matmul %73, %74, %cst_54 {dimension_numbers = #tpu.dot_dimension_numbers<[1], [0], [0], [1], [0, 0, 1, 1], [], []>} : vector<16x1216xbf16>, vector<1216x128xbf16>, vector<16x128xf32> -> vector<16x128xf32>
      %c0_55 = arith.constant 0 : index
      %c0_56 = arith.constant 0 : index
      %76 = vector.load %arg5[%c0_55, %c0_56] : memref<1x128xf32, #tpu.memory_space<vmem>>, vector<1x128xf32>
      %77 = vector.broadcast %76 : vector<1x128xf32> to vector<16x128xf32>
      %78 = arith.addf %75, %77 : vector<16x128xf32>
      %cst_57 = arith.constant 0.000000e+00 : f32
      %79 = vector.broadcast %cst_57 : f32 to vector<16x128xf32>
      %80 = arith.maximumf %78, %79 : vector<16x128xf32>
      %c0_58 = arith.constant 0 : index
      %c0_59 = arith.constant 0 : index
      %c0_60 = arith.constant 0 : index
      %81 = vector.load %arg10[%c0_58, %c0_59, %c0_60] : memref<1x16x128xf32, #tpu.memory_space<vmem>>, vector<1x16x128xf32>
      %82 = vector.shape_cast %81 : vector<1x16x128xf32> to vector<16x128xf32>
      %83 = vector.shape_cast %80 : vector<16x128xf32> to vector<1x16x128xf32>
      tpu.vector_store %arg10[%c0_58, %c0_59, %c0_60], %83 {strides = array<i32>} : memref<1x16x128xf32, #tpu.memory_space<vmem>>, vector<1x16x128xf32>,
    } else {
    }
    return
  }
  func.func @transform_0(%arg0: i32, %arg1: i32) -> (i32, i32, i32) {
    %c0_i32 = arith.constant 0 : i32
    %c0_i32_0 = arith.constant 0 : i32
    %c0_i32_1 = arith.constant 0 : i32
    return %arg1, %c0_i32, %c0_i32_0 : i32, i32, i32
  }
  func.func @transform_1(%arg0: i32, %arg1: i32) -> (i32, i32) {
    %c0_i32 = arith.constant 0 : i32
    %c0_i32_0 = arith.constant 0 : i32
    %c0_i32_1 = arith.constant 0 : i32
    return %c0_i32, %c0_i32_0 : i32, i32
  }
  func.func @transform_2(%arg0: i32, %arg1: i32) -> (i32, i32) {
    %c0_i32 = arith.constant 0 : i32
    %c0_i32_0 = arith.constant 0 : i32
    %c0_i32_1 = arith.constant 0 : i32
    return %c0_i32, %c0_i32_0 : i32, i32
  }
  func.func @transform_3(%arg0: i32, %arg1: i32) -> (i32, i32) {
    %c0_i32 = arith.constant 0 : i32
    %c0_i32_0 = arith.constant 0 : i32
    %c0_i32_1 = arith.constant 0 : i32
    return %c0_i32, %c0_i32_0 : i32, i32
  }
  func.func @transform_4(%arg0: i32, %arg1: i32) -> (i32, i32) {
    %c0_i32 = arith.constant 0 : i32
    %c0_i32_0 = arith.constant 0 : i32
    %c0_i32_1 = arith.constant 0 : i32
    return %c0_i32, %c0_i32_0 : i32, i32
  }
  func.func @transform_5(%arg0: i32, %arg1: i32) -> (i32, i32) {
    %c0_i32 = arith.constant 0 : i32
    %c0_i32_0 = arith.constant 0 : i32
    %c0_i32_1 = arith.constant 0 : i32
    return %c0_i32, %c0_i32_0 : i32, i32
  }
  func.func @transform_6(%arg0: i32, %arg1: i32) -> (i32, i32) {
    %c0_i32 = arith.constant 0 : i32
    %c0_i32_0 = arith.constant 0 : i32
    %c0_i32_1 = arith.constant 0 : i32
    return %c0_i32, %c0_i32_0 : i32, i32
  }
  func.func @transform_7(%arg0: i32, %arg1: i32) -> (i32, i32) {
    %c0_i32 = arith.constant 0 : i32
    %c0_i32_0 = arith.constant 0 : i32
    %c0_i32_1 = arith.constant 0 : i32
    return %c0_i32, %c0_i32_0 : i32, i32
  }
  func.func @transform_8(%arg0: i32, %arg1: i32) -> (i32, i32, i32) {
    %0 = arith.muli %arg0, %arg1 : i32
    %c0_i32 = arith.constant 0 : i32
    %c0_i32_0 = arith.constant 0 : i32
    %c0_i32_1 = arith.constant 0 : i32
    return %0, %c0_i32, %c0_i32_0 : i32, i32, i32
  }
}

</mosaic_0001>

<llo_original>
// kernel: tpu_custom_call.1
$region0: #{tpu_custom_call.1}
  #allocation0 [shape = 'u32[]', space=smem, size = 0x4, offset = 0x4, fixed_abs, tag = 'smem constant byte address 0x4 - core index']
  #allocation1 [shape = 'u32[72,128]{1,0:T(1,128)}', space=vmem, size = 0x9000, scoped, tag = 'internal scratch']
  #allocation2 [shape = 'f32[2,16,128]{2,1,0:T(8,128)}', space=vmem, size = 0x4000, scoped, tag = 'scratch operand']
  #allocation3 [shape = 'f32[2,8]{1,0:T(2,128)}', space=vmem, size = 0x400, scoped, tag = 'scratch operand']
  #allocation4 [shape = 'f32[18,72]{1,0:T(8,128)}', space=vmem, size = 0x3000, scoped, tag = 'scratch operand']
  #allocation5 [shape = 'f32[18,144]{1,0:T(8,128)}', space=vmem, size = 0x6000, scoped, tag = 'scratch operand']
  #allocation6 [shape = 'bf16[16,576]{1,0:T(8,128)(2,1)}', space=vmem, size = 0x5000, scoped, tag = 'scratch operand']
  #allocation7 [shape = 'bf16[16,1216]{1,0:T(8,128)(2,1)}', space=vmem, size = 0xa000, scoped, tag = 'scratch operand']
  %s0 = inlined_call_operand.vmem [shape: f32[2,16,64], index: 0, kind: input, shape index: {}]
  %s1 = inlined_call_operand.hbm [shape: bf16[576,128], index: 1, kind: input, shape index: {}]
  %s2 = inlined_call_operand.hbm [shape: bf16[1216,128], index: 2, kind: input, shape index: {}]
  %s3 = inlined_call_operand.vmem [shape: f32[1,128], index: 3, kind: input, shape index: {}]
  %s4 = inlined_call_operand.vmem [shape: f32[1,8], index: 4, kind: input, shape index: {}]
  %s5 = inlined_call_operand.vmem [shape: f32[1,8], index: 5, kind: input, shape index: {}]
  %s6 = inlined_call_operand.vmem [shape: f32[128,8], index: 6, kind: input, shape index: {}]
  %s7 = inlined_call_operand.vmem [shape: f32[8,128], index: 7, kind: input, shape index: {}]
  %s8 = inlined_call_operand.hbm [shape: f32[2,16,128], index: 8, kind: output, shape index: {}]
  %s9 = sld [smem:[#allocation0]]
  $region85: #{tpu_custom_call.1} parent=0
    _
  %s11 = ssub.s32 1, %s9
  %s12 = scalar_select 0, %s11, %s9
  $region1: #{tpu_custom_call.1} parent=0
    #allocation8 [shape = 'u8[147456]{0}', space=vmem, size = 0x24000, scoped, tag = 'input window, operand 1, single buffered']
    #allocation9 [shape = 's32[2]{0}', space=sflag, size = 0x8, scoped, tag = 'scoped memory for tpu_custom_call.1']
    #allocation10 [shape = 's32[2]{0}', space=sflag, size = 0x8, scoped, tag = 'scoped memory for tpu_custom_call.1']
    #allocation11 [shape = 'u8[311296]{0}', space=vmem, size = 0x4c000, scoped, tag = 'input window, operand 2, single buffered']
    #allocation12 [shape = 's32[1]{0}', space=sflag, size = 0x4, scoped, tag = 'scoped memory for tpu_custom_call.1']
    #allocation13 [shape = 'u8[16384]{0}', space=vmem, size = 0x4000, scoped, tag = 'output window, operand 0']
    %13 = vsyncpa [#allocation9], 0
    %14 = vsyncpa [#allocation12], 0
    %15 = vsyncpa [#allocation10], 0
    %s16 = scalar_lea.sflag [#allocation10], 1
    %17 = vsyncpa %s16, 0
    loop: start=0, step=1, limit=6
    $region2: #{tpu_custom_call.1} parent=1 // loop_pre_header
      _
    $region3: #{tpu_custom_call.1} parent=1 // loop_header
      %s19 = sphi 0, %s23
      %p20 = scmp.ge.s32.totalorder %s19, 6
      %s26 = sphi 0, %s38
      %s27 = sphi 0, %s34
      %s28 = sphi 0, %s26
      %s29 = sphi 0, %s27
      %s30 = sphi 0, %s28
      %s31 = sphi 0, %s29
      %s41 = sphi 0, %s43
      %s44 = sphi 0, %s41
      %s45 = sphi 0, %s44
      %s61 = sphi 0, %s45
      %s65 = sphi 0, %s65
      %s67 = sphi 0, %s65
      %s68 = sphi 0, %s67
      %s82 = sphi 0, %s68
      %s86 = sphi 0, %s86
      %s88 = sphi 0, %s86
      %s89 = sphi 0, %s88
      %s103 = sphi 0, %s89
      %s107 = sphi 0, %s107
      %s109 = sphi 0, %s107
      %s110 = sphi 0, %s109
      %s124 = sphi 0, %s110
      %s128 = sphi 0, %s128
      %s130 = sphi 0, %s128
      %s131 = sphi 0, %s130
      %s145 = sphi 0, %s131
      %s149 = sphi 0, %s149
      %s151 = sphi 0, %s149
      %s152 = sphi 0, %s151
      %s166 = sphi 0, %s152
      %s170 = sphi 0, %s170
      %s172 = sphi 0, %s170
      %s173 = sphi 0, %s172
      %s187 = sphi 0, %s173
      %s191 = sphi 0, %s191
      %s193 = sphi 0, %s191
      %s194 = sphi 0, %s193
      %s208 = sphi 0, %s194
      %s216 = sphi 0, %s218
      %s219 = sphi 0, %s216
      %s220 = sphi 0, %s219
      %s236 = sphi 0, %s220
    $region4: #{tpu_custom_call.1} parent=1 // loop_header_branch
      %22 = sbr.rel (%p20) target = $region8
    $region5: #{tpu_custom_call.1} parent=1 // loop_body
      %s24 = ssub.s32 %s19, 1
      %s25 = ssub.s32 %s19, 2
      %s32 = sadd.s32 1, %s27
      %p33 = scmp.ge.s32.totalorder %s32, 2
      %s34 = scalar_select %p33, 0, %s32
      %s35 = sadd.s32 1, %s26
      %s36 = scalar_select %p33, %s35, %s26
      %p37 = scmp.ge.s32.totalorder %s36, 2
      %s38 = scalar_select %p37, 0, %s36
      %s39 = ssub.s32 %s27, %s34
      %p40 = scmp.eq.s32.totalorder %s39, 0
      %s42 = sadd.s32 %s41, 1
      %s43 = scalar_select %p40, %s41, %s42
      %p46 = pneg %p40
      %p47 = scmp.eq.s32.totalorder %s19, 3
      %p48 = por %p46, %p47
      %p49 = scmp.ne.s32.totalorder %s41, %s44
      %p50 = scmp.eq.s32.totalorder %s19, 0
      %p51 = por %p49, %p50
      %p52 = scmp.ne.s32.totalorder %s41, %s44
      %p53 = scmp.eq.s32.totalorder %s24, 3
      %p54 = por %p52, %p53
      %p55 = scmp.ne.s32.totalorder %s44, %s45
      %p56 = scmp.eq.s32.totalorder %s24, 0
      %p57 = por %p55, %p56
      %p58 = scmp.ne.s32.totalorder %s44, %s45
      %p59 = scmp.eq.s32.totalorder %s25, 3
      %p60 = por %p58, %p59
      %p62 = scmp.ne.s32.totalorder %s45, %s61
      %p63 = scmp.eq.s32.totalorder %s25, 0
      %p64 = por %p62, %p63
      %s66 = sadd.s32 %s65, 1
      %p69 = scmp.eq.s32.totalorder %s19, 3
      %p70 = scmp.ne.s32.totalorder %s65, %s67
      %p71 = scmp.eq.s32.totalorder %s19, 0
      %p72 = por %p70, %p71
      %p73 = scmp.ne.s32.totalorder %s65, %s67
      %p74 = scmp.eq.s32.totalorder %s24, 3
      %p75 = por %p73, %p74
      %p76 = scmp.ne.s32.totalorder %s67, %s68
      %p77 = scmp.eq.s32.totalorder %s24, 0
      %p78 = por %p76, %p77
      %p79 = scmp.ne.s32.totalorder %s67, %s68
      %p80 = scmp.eq.s32.totalorder %s25, 3
      %p81 = por %p79, %p80
      %p83 = scmp.ne.s32.totalorder %s68, %s82
      %p84 = scmp.eq.s32.totalorder %s25, 0
      %p85 = por %p83, %p84
      %s87 = sadd.s32 %s86, 1
      %p90 = scmp.eq.s32.totalorder %s19, 3
      %p91 = scmp.ne.s32.totalorder %s86, %s88
      %p92 = scmp.eq.s32.totalorder %s19, 0
      %p93 = por %p91, %p92
      %p94 = scmp.ne.s32.totalorder %s86, %s88
      %p95 = scmp.eq.s32.totalorder %s24, 3
      %p96 = por %p94, %p95
      %p97 = scmp.ne.s32.totalorder %s88, %s89
      %p98 = scmp.eq.s32.totalorder %s24, 0
      %p99 = por %p97, %p98
      %p100 = scmp.ne.s32.totalorder %s88, %s89
      %p101 = scmp.eq.s32.totalorder %s25, 3
      %p102 = por %p100, %p101
      %p104 = scmp.ne.s32.totalorder %s89, %s103
      %p105 = scmp.eq.s32.totalorder %s25, 0
      %p106 = por %p104, %p105
      %s108 = sadd.s32 %s107, 1
      %p111 = scmp.eq.s32.totalorder %s19, 3
      %p112 = scmp.ne.s32.totalorder %s107, %s109
      %p113 = scmp.eq.s32.totalorder %s19, 0
      %p114 = por %p112, %p113
      %p115 = scmp.ne.s32.totalorder %s107, %s109
      %p116 = scmp.eq.s32.totalorder %s24, 3
      %p117 = por %p115, %p116
      %p118 = scmp.ne.s32.totalorder %s109, %s110
      %p119 = scmp.eq.s32.totalorder %s24, 0
      %p120 = por %p118, %p119
      %p121 = scmp.ne.s32.totalorder %s109, %s110
      %p122 = scmp.eq.s32.totalorder %s25, 3
      %p123 = por %p121, %p122
      %p125 = scmp.ne.s32.totalorder %s110, %s124
      %p126 = scmp.eq.s32.totalorder %s25, 0
      %p127 = por %p125, %p126
      %s129 = sadd.s32 %s128, 1
      %p132 = scmp.eq.s32.totalorder %s19, 3
      %p133 = scmp.ne.s32.totalorder %s128, %s130
      %p134 = scmp.eq.s32.totalorder %s19, 0
      %p135 = por %p133, %p134
      %p136 = scmp.ne.s32.totalorder %s128, %s130
      %p137 = scmp.eq.s32.totalorder %s24, 3
      %p138 = por %p136, %p137
      %p139 = scmp.ne.s32.totalorder %s130, %s131
      %p140 = scmp.eq.s32.totalorder %s24, 0
      %p141 = por %p139, %p140
      %p142 = scmp.ne.s32.totalorder %s130, %s131
      %p143 = scmp.eq.s32.totalorder %s25, 3
      %p144 = por %p142, %p143
      %p146 = scmp.ne.s32.totalorder %s131, %s145
      %p147 = scmp.eq.s32.totalorder %s25, 0
      %p148 = por %p146, %p147
      %s150 = sadd.s32 %s149, 1
      %p153 = scmp.eq.s32.totalorder %s19, 3
      %p154 = scmp.ne.s32.totalorder %s149, %s151
      %p155 = scmp.eq.s32.totalorder %s19, 0
      %p156 = por %p154, %p155
      %p157 = scmp.ne.s32.totalorder %s149, %s151
      %p158 = scmp.eq.s32.totalorder %s24, 3
      %p159 = por %p157, %p158
      %p160 = scmp.ne.s32.totalorder %s151, %s152
      %p161 = scmp.eq.s32.totalorder %s24, 0
      %p162 = por %p160, %p161
      %p163 = scmp.ne.s32.totalorder %s151, %s152
      %p164 = scmp.eq.s32.totalorder %s25, 3
      %p165 = por %p163, %p164
      %p167 = scmp.ne.s32.totalorder %s152, %s166
      %p168 = scmp.eq.s32.totalorder %s25, 0
      %p169 = por %p167, %p168
      %s171 = sadd.s32 %s170, 1
      %p174 = scmp.eq.s32.totalorder %s19, 3
      %p175 = scmp.ne.s32.totalorder %s170, %s172
      %p176 = scmp.eq.s32.totalorder %s19, 0
      %p177 = por %p175, %p176
      %p178 = scmp.ne.s32.totalorder %s170, %s172
      %p179 = scmp.eq.s32.totalorder %s24, 3
      %p180 = por %p178, %p179
      %p181 = scmp.ne.s32.totalorder %s172, %s173
      %p182 = scmp.eq.s32.totalorder %s24, 0
      %p183 = por %p181, %p182
      %p184 = scmp.ne.s32.totalorder %s172, %s173
      %p185 = scmp.eq.s32.totalorder %s25, 3
      %p186 = por %p184, %p185
      %p188 = scmp.ne.s32.totalorder %s173, %s187
      %p189 = scmp.eq.s32.totalorder %s25, 0
      %p190 = por %p188, %p189
      %s192 = sadd.s32 %s191, 1
      %p195 = scmp.eq.s32.totalorder %s19, 3
      %p196 = scmp.ne.s32.totalorder %s191, %s193
      %p197 = scmp.eq.s32.totalorder %s19, 0
      %p198 = por %p196, %p197
      %p199 = scmp.ne.s32.totalorder %s191, %s193
      %p200 = scmp.eq.s32.totalorder %s24, 3
      %p201 = por %p199, %p200
      %p202 = scmp.ne.s32.totalorder %s193, %s194
      %p203 = scmp.eq.s32.totalorder %s24, 0
      %p204 = por %p202, %p203
      %p205 = scmp.ne.s32.totalorder %s193, %s194
      %p206 = scmp.eq.s32.totalorder %s25, 3
      %p207 = por %p205, %p206
      %p209 = scmp.ne.s32.totalorder %s194, %s208
      %p210 = scmp.eq.s32.totalorder %s25, 0
      %p211 = por %p209, %p210
      %s212 = smul.u32 %s26, %s27
      %s213 = smul.u32 %s38, %s34
      %s214 = ssub.s32 %s212, %s213
      %p215 = scmp.eq.s32.totalorder %s214, 0
      %s217 = sadd.s32 %s216, 1
      %s218 = scalar_select %p215, %s216, %s217
      %p221 = pneg %p215
      %p222 = scmp.eq.s32.totalorder %s19, 3
      %p223 = por %p221, %p222
      %p224 = scmp.ne.s32.totalorder %s216, %s219
      %p225 = scmp.eq.s32.totalorder %s19, 0
      %p226 = por %p224, %p225
      %p227 = scmp.ne.s32.totalorder %s216, %s219
      %p228 = scmp.eq.s32.totalorder %s24, 3
      %p229 = por %p227, %p228
      %p230 = scmp.ne.s32.totalorder %s219, %s220
      %p231 = scmp.eq.s32.totalorder %s24, 0
      %p232 = por %p230, %p231
      %p233 = scmp.ne.s32.totalorder %s219, %s220
      %p234 = scmp.eq.s32.totalorder %s25, 3
      %p235 = por %p233, %p234
      %p237 = scmp.ne.s32.totalorder %s220, %s236
      %p238 = scmp.eq.s32.totalorder %s25, 0
      %p239 = por %p237, %p238
      %p240 = scmp.le.s32.totalorder 1, %s19
      %p241 = scmp.lt.s32.totalorder %s19, 5
      %p242 = pnand %p240, %p241
      %p243 = pneg %p242
      // Predicated region
      $region9: #{tpu_custom_call.1} parent=5 // pred_check
        _
      $region10: #{tpu_custom_call.1} parent=5 // pred_check_branch
        %245 = sbr.rel (%p242) target = $region12
      $region11: #{tpu_custom_call.1} parent=5 // pred_region
        %s246 = ssub.s32 %s19, 1
        // Predicated region
        $region13: #{tpu_custom_call.1} parent=11 // pred_check
          %p247 = pneg %p78
        $region14: #{tpu_custom_call.1} parent=11 // pred_check_branch
          %249 = sbr.rel (%p247) target = $region16
        $region15: #{tpu_custom_call.1} parent=11 // pred_region
          %251 = vsyncadd [#allocation9], 0
          %s252 = sshll.u32 %s1, 4
          %s253 = int_to_ptr.hbm [resolvable:$true] %s252
          %s254 = sshll.u32 [#allocation8], 4
          %s255 = int_to_ptr.vmem [resolvable:$true] %s254
          %260 = dma.hbm_to_vmem [thread:$0]  %s253, 4608, %s255, [#allocation9], 64, 64, 4
        $region16: #{tpu_custom_call.1} parent=11 // pred_fallthru
          _
        // Predicated region
        $region17: #{tpu_custom_call.1} parent=11 // pred_check
          %p261 = pneg %p99
        $region18: #{tpu_custom_call.1} parent=11 // pred_check_branch
          %263 = sbr.rel (%p261) target = $region20
        $region19: #{tpu_custom_call.1} parent=11 // pred_region
          %265 = vsyncadd [#allocation12], 0
          %s266 = sshll.u32 %s2, 4
          %s267 = int_to_ptr.hbm [resolvable:$true] %s266
          %s268 = sshll.u32 [#allocation11], 4
          %s269 = int_to_ptr.vmem [resolvable:$true] %s268
          %274 = dma.hbm_to_vmem [thread:$0]  %s267, 9728, %s269, [#allocation12], 64, 64, 4
        $region20: #{tpu_custom_call.1} parent=11 // pred_fallthru
          _
        // Predicated region
        $region21: #{tpu_custom_call.1} parent=11 // pred_check
          %p275 = pneg %p120
        $region22: #{tpu_custom_call.1} parent=11 // pred_check_branch
          %277 = sbr.rel (%p275) target = $region24
        $region23: #{tpu_custom_call.1} parent=11 // pred_region
          _
        $region24: #{tpu_custom_call.1} parent=11 // pred_fallthru
          _
        // Predicated region
        $region25: #{tpu_custom_call.1} parent=11 // pred_check
          %p278 = pneg %p141
        $region26: #{tpu_custom_call.1} parent=11 // pred_check_branch
          %280 = sbr.rel (%p278) target = $region28
        $region27: #{tpu_custom_call.1} parent=11 // pred_region
          _
        $region28: #{tpu_custom_call.1} parent=11 // pred_fallthru
          _
        // Predicated region
        $region29: #{tpu_custom_call.1} parent=11 // pred_check
          %p281 = pneg %p162
        $region30: #{tpu_custom_call.1} parent=11 // pred_check_branch
          %283 = sbr.rel (%p281) target = $region32
        $region31: #{tpu_custom_call.1} parent=11 // pred_region
          _
        $region32: #{tpu_custom_call.1} parent=11 // pred_fallthru
          _
        // Predicated region
        $region33: #{tpu_custom_call.1} parent=11 // pred_check
          %p284 = pneg %p183
        $region34: #{tpu_custom_call.1} parent=11 // pred_check_branch
          %286 = sbr.rel (%p284) target = $region36
        $region35: #{tpu_custom_call.1} parent=11 // pred_region
          _
        $region36: #{tpu_custom_call.1} parent=11 // pred_fallthru
          _
        // Predicated region
        $region37: #{tpu_custom_call.1} parent=11 // pred_check
          %p287 = pneg %p204
        $region38: #{tpu_custom_call.1} parent=11 // pred_check_branch
          %289 = sbr.rel (%p287) target = $region40
        $region39: #{tpu_custom_call.1} parent=11 // pred_region
          _
        $region40: #{tpu_custom_call.1} parent=11 // pred_fallthru
          _
      $region12: #{tpu_custom_call.1} parent=5 // pred_fallthru
        _
      %p290 = scmp.lt.s32.totalorder %s19, 4
      // Predicated region
      $region41: #{tpu_custom_call.1} parent=5 // pred_check
        %p291 = pneg %p290
      $region42: #{tpu_custom_call.1} parent=5 // pred_check_branch
        %293 = sbr.rel (%p291) target = $region44
      $region43: #{tpu_custom_call.1} parent=5 // pred_region
        // Predicated region
        $region45: #{tpu_custom_call.1} parent=43 // pred_check
          %p294 = pneg %p51
        $region46: #{tpu_custom_call.1} parent=43 // pred_check_branch
          %296 = sbr.rel (%p294) target = $region48
        $region47: #{tpu_custom_call.1} parent=43 // pred_region
          %p297 = scmp.lt.s32.totalorder %s27, 1
          %s298 = scalar_select %p297, %s27, 1
          %s299 = smul.addr %s298, 2
          %s300 = smul.addr %s299, 8
          %s301 = scalar_lea.vmem %s0, %s300
        $region48: #{tpu_custom_call.1} parent=43 // pred_fallthru
          _
      $region44: #{tpu_custom_call.1} parent=5 // pred_fallthru
        _
      %p302 = scmp.le.s32.totalorder 1, %s19
      %p303 = scmp.lt.s32.totalorder %s19, 5
      %p304 = pnand %p302, %p303
      %p305 = pneg %p304
      // Predicated region
      $region49: #{tpu_custom_call.1} parent=5 // pred_check
        _
      $region50: #{tpu_custom_call.1} parent=5 // pred_check_branch
        %307 = sbr.rel (%p304) target = $region52
      $region51: #{tpu_custom_call.1} parent=5 // pred_region
        %s308 = ssub.s32 %s19, 1
        // Predicated region
        $region53: #{tpu_custom_call.1} parent=51 // pred_check
          %p309 = pneg %p78
        $region54: #{tpu_custom_call.1} parent=51 // pred_check_branch
          %311 = sbr.rel (%p309) target = $region56
        $region55: #{tpu_custom_call.1} parent=51 // pred_region
          %313 = dma.done [#allocation9], 4608
        $region56: #{tpu_custom_call.1} parent=51 // pred_fallthru
          _
        // Predicated region
        $region57: #{tpu_custom_call.1} parent=51 // pred_check
          %p314 = pneg %p99
        $region58: #{tpu_custom_call.1} parent=51 // pred_check_branch
          %316 = sbr.rel (%p314) target = $region60
        $region59: #{tpu_custom_call.1} parent=51 // pred_region
          %318 = dma.done [#allocation12], 9728
        $region60: #{tpu_custom_call.1} parent=51 // pred_fallthru
          _
        %p319 = scmp.lt.s32.totalorder %s29, 1
        %s320 = scalar_select %p319, %s29, 1
        %s321 = smul.addr %s320, 2
        %s322 = smul.addr %s321, 8
        %s323 = scalar_lea.vmem %s0, %s322
        %p324 = pneg %p57
        %p325 = pneg %p54
        %p326 = pneg %p78
        %p327 = pneg %p75
        %p328 = pneg %p99
        %p329 = pneg %p96
        %p330 = pneg %p120
        %p331 = pneg %p117
        %p332 = pneg %p141
        %p333 = pneg %p138
        %p334 = pneg %p162
        %p335 = pneg %p159
        %p336 = pneg %p183
        %p337 = pneg %p180
        %p338 = pneg %p204
        %p339 = pneg %p201
        %p340 = pneg %p232
        %p341 = pneg %p229
        %s342 = sand.u32 %s219, 1
        %s343 = scalar_lea.sflag [#allocation10], %s342
        %s344 = sand.u32 %s219, 1
        %s345 = smul.addr %s344, 16
        %s346 = scalar_lea.vmem [#allocation13], %s345
        %p347 = scmp.lt.s32.totalorder %s29, 1
        %s348 = scalar_select %p347, %s29, 1
        %s349 = smul.addr %s348, 2
        %s350 = smul.addr %s349, 8
        %s351 = scalar_lea.vmem %s0, %s350
        %s352 = smul.u32 %s28, %s29
        %p354 = scmp.eq.s32.totalorder %s28, 0
        %p355 = scmp.eq.s32.totalorder %s29, 0
        %p356 = pnand %p354, %p355
        %p357 = pneg %p356
        // Predicated region
        $region61: #{tpu_custom_call.1} parent=51 // pred_check
          _
        $region62: #{tpu_custom_call.1} parent=51 // pred_check_branch
          %359 = sbr.rel (%p356) target = $region64
        $region63: #{tpu_custom_call.1} parent=51 // pred_region
          %vm360 = vcmask 588800
          %361 = vst.msk [vmem:[#allocation4] sm:$0xff] %vm360, 0.0
          %362 = vst.msk [vmem:[#allocation4 + $0x8] sm:$0xff] %vm360, 0.0
          %vm363 = vcmask 582656
          %364 = vst.msk [vmem:[#allocation4 + $0x10] sm:$0x3] %vm363, 0.0
          %365 = vst [vmem:[#allocation5] sm:$0xff] 0.0
          %vm366 = vcmask 130048
          %367 = vst.msk [vmem:[#allocation5 + $0x8] sm:$0xff] %vm366, 0.0
          %368 = vst [vmem:[#allocation5 + $0x10] sm:$0xff] 0.0
          %369 = vst.msk [vmem:[#allocation5 + $0x18] sm:$0xff] %vm366, 0.0
          %370 = vst [vmem:[#allocation5 + $0x20] sm:$0x3] 0.0
          %vm371 = vcmask 123904
          %372 = vst.msk [vmem:[#allocation5 + $0x28] sm:$0x3] %vm371, 0.0
          %vm373 = vcmask 58368
          %374 = vst.msk [vmem:[#allocation3] sm:$0x3] %vm373, 0.0
        $region64: #{tpu_custom_call.1} parent=51 // pred_fallthru
          _
        // Predicated region
        $region65: #{tpu_custom_call.1} parent=51 // pred_check
          %p375 = pneg %p354
        $region66: #{tpu_custom_call.1} parent=51 // pred_check_branch
          %377 = sbr.rel (%p375) target = $region68
        $region67: #{tpu_custom_call.1} parent=51 // pred_region
          %v378 = vld [vmem:[%s351] sm:$0xff]
          %v379 = vld [vmem:[%s351 + $0x8] sm:$0xff]
          %382 = vrot.lane.b32.xlu0 %v378, 4
          %v383 = vpop.permute.xlu0 %382
          %384 = vrot.lane.b32.xlu0 %v379, 4
          %v385 = vpop.permute.xlu0 %384
          %vm388 = vcmask 556064
          %389 = vst.msk [vmem:[#allocation4 + $0x1] sm:$0xff] %vm388, %v383
          %390 = vst.msk [vmem:[#allocation4 + $0x9] sm:$0xff] %vm388, %v385
          %v391 = vld [vmem:[#allocation4] sm:$0xff]
          %v392 = vld [vmem:[#allocation4 + $0x8] sm:$0xff]
          %v393 = vpack.c.bf16 %v391, %v391
          %v394 = vpack.c.bf16 %v392, %v392
          %vm395 = vcmask 519168
          %396 = vst.msk [vmem:[#allocation6] sm:$0xf] %vm395, %v393
          %397 = vst.msk [vmem:[#allocation6 + $0x14] sm:$0xf] %vm395, %v394
          %v398 = vld [vmem:[#allocation4] sm:$0xff]
          %v399 = vld [vmem:[#allocation4 + $0x8] sm:$0xff]
          %v400 = vpack.c.bf16 %v398, %v398
          %v401 = vpack.c.bf16 %v399, %v399
          %404 = vrot.lane.b32.xlu0 %v400, 60
          %v405 = vpop.permute.xlu0 %404
          %406 = vrot.lane.b32.xlu0 %v401, 60
          %v407 = vpop.permute.xlu0 %406
          %vm410 = vcmask 1043968
          %411 = vst.msk [vmem:[#allocation6] sm:$0xf] %vm410, %v405
          %412 = vst.msk [vmem:[#allocation6 + $0x14] sm:$0xf] %vm410, %v407
          %v413 = vld [vmem:[#allocation4] sm:$0xff]
          %v414 = vld [vmem:[#allocation4 + $0x8] sm:$0xff]
          %v415 = vpack.c.bf16 %v413, %v413
          %v416 = vpack.c.bf16 %v414, %v414
          %419 = vrot.lane.b32.xlu0 %v415, 120
          %v420 = vpop.permute.xlu0 %419
          %421 = vrot.lane.b32.xlu0 %v416, 120
          %v422 = vpop.permute.xlu0 %421
          %425 = vst.msk [vmem:[#allocation6 + $0x4] sm:$0xf] %vm395, %v420
          %426 = vst.msk [vmem:[#allocation6 + $0x18] sm:$0xf] %vm395, %v422
          %v427 = vld [vmem:[#allocation4 + $0x1] sm:$0xff]
          %v428 = vld [vmem:[#allocation4 + $0x9] sm:$0xff]
          %v429 = vpack.c.bf16 %v427, %v427
          %v430 = vpack.c.bf16 %v428, %v428
          %433 = vrot.lane.b32.xlu0 %v429, 64
          %v434 = vpop.permute.xlu0 %433
          %435 = vrot.lane.b32.xlu0 %v430, 64
          %v436 = vpop.permute.xlu0 %435
          %439 = vst.msk [vmem:[#allocation6 + $0x4] sm:$0xf] %vm410, %v434
          %440 = vst.msk [vmem:[#allocation6 + $0x18] sm:$0xf] %vm410, %v436
          %v441 = vld [vmem:[#allocation4 + $0x1] sm:$0xff]
          %v442 = vld [vmem:[#allocation4 + $0x9] sm:$0xff]
          %v443 = vpack.c.bf16 %v441, %v441
          %v444 = vpack.c.bf16 %v442, %v442
          %447 = vrot.lane.b32.xlu0 %v443, 124
          %v448 = vpop.permute.xlu0 %447
          %449 = vrot.lane.b32.xlu0 %v444, 124
          %v450 = vpop.permute.xlu0 %449
          %453 = vst.msk [vmem:[#allocation6 + $0x8] sm:$0xf] %vm395, %v448
          %454 = vst.msk [vmem:[#allocation6 + $0x1c] sm:$0xf] %vm395, %v450
          %v455 = vld [vmem:[#allocation4 + $0x1] sm:$0xff]
          %v456 = vld [vmem:[#allocation4 + $0x9] sm:$0xff]
          %v457 = vpack.c.bf16 %v455, %v455
          %v458 = vpack.c.bf16 %v456, %v456
          %461 = vrot.lane.b32.xlu0 %v457, 56
          %v462 = vpop.permute.xlu0 %461
          %463 = vrot.lane.b32.xlu0 %v458, 56
          %v464 = vpop.permute.xlu0 %463
          %467 = vst.msk [vmem:[#allocation6 + $0x8] sm:$0xf] %vm410, %v462
          %468 = vst.msk [vmem:[#allocation6 + $0x1c] sm:$0xf] %vm410, %v464
          %v469 = vld [vmem:[#allocation4 + $0x2] sm:$0xff]
          %v470 = vld [vmem:[#allocation4 + $0xa] sm:$0xff]
          %v471 = vpack.c.bf16 %v469, %v469
          %v472 = vpack.c.bf16 %v470, %v470
          %473 = vst.msk [vmem:[#allocation6 + $0xc] sm:$0xf] %vm395, %v471
          %474 = vst.msk [vmem:[#allocation6 + $0x20] sm:$0xf] %vm395, %v472
          %v475 = vld [vmem:[#allocation4 + $0x2] sm:$0xff]
          %v476 = vld [vmem:[#allocation4 + $0xa] sm:$0xff]
          %v477 = vpack.c.bf16 %v475, %v475
          %v478 = vpack.c.bf16 %v476, %v476
          %481 = vrot.lane.b32.xlu0 %v477, 60
          %v482 = vpop.permute.xlu0 %481
          %483 = vrot.lane.b32.xlu0 %v478, 60
          %v484 = vpop.permute.xlu0 %483
          %487 = vst.msk [vmem:[#allocation6 + $0xc] sm:$0xf] %vm410, %v482
          %488 = vst.msk [vmem:[#allocation6 + $0x20] sm:$0xf] %vm410, %v484
          %v489 = vld [vmem:[#allocation4 + $0x2] sm:$0xff]
          %v490 = vld [vmem:[#allocation4 + $0xa] sm:$0xff]
          %v491 = vpack.c.bf16 %v489, %v489
          %v492 = vpack.c.bf16 %v490, %v490
          %495 = vrot.lane.b32.xlu0 %v491, 120
          %v496 = vpop.permute.xlu0 %495
          %497 = vrot.lane.b32.xlu0 %v492, 120
          %v498 = vpop.permute.xlu0 %497
          %501 = vst.msk [vmem:[#allocation6 + $0x10] sm:$0xf] %vm395, %v496
          %502 = vst.msk [vmem:[#allocation6 + $0x24] sm:$0xf] %vm395, %v498
          %v503 = vld [vmem:[#allocation6] sm:$0xff]
          %v504 = vld [vmem:[#allocation6 + $0x8] sm:$0xff]
          %v505 = vld [vmem:[#allocation6 + $0x10] sm:$0xf]
          %v506 = vld [vmem:[#allocation6 + $0x14] sm:$0xff]
          %v507 = vld [vmem:[#allocation6 + $0x1c] sm:$0xff]
          %v508 = vld [vmem:[#allocation6 + $0x24] sm:$0xf]
          %v509 = vld [vmem:[#allocation8] sm:$0xf]
          %v510 = vld [vmem:[#allocation8 + $0x4] sm:$0xf]
          %v511 = vld [vmem:[#allocation8 + $0x8] sm:$0xf]
          %v512 = vld [vmem:[#allocation8 + $0xc] sm:$0xf]
          %v513 = vld [vmem:[#allocation8 + $0x10] sm:$0xf]
          %v514 = vld [vmem:[#allocation8 + $0x14] sm:$0xf]
          %v515 = vld [vmem:[#allocation8 + $0x18] sm:$0xf]
          %v516 = vld [vmem:[#allocation8 + $0x1c] sm:$0xf]
          %v517 = vld [vmem:[#allocation8 + $0x20] sm:$0xf]
          %v518 = vld [vmem:[#allocation8 + $0x24] sm:$0xf]
          %v519 = vld [vmem:[#allocation8 + $0x28] sm:$0xf]
          %v520 = vld [vmem:[#allocation8 + $0x2c] sm:$0xf]
          %v521 = vld [vmem:[#allocation8 + $0x30] sm:$0xf]
          %v522 = vld [vmem:[#allocation8 + $0x34] sm:$0xf]
          %v523 = vld [vmem:[#allocation8 + $0x38] sm:$0xf]
          %v524 = vld [vmem:[#allocation8 + $0x3c] sm:$0xf]
          %v525 = vld [vmem:[#allocation8 + $0x40] sm:$0xf]
          %v526 = vld [vmem:[#allocation8 + $0x44] sm:$0xf]
          %v527 = vld [vmem:[#allocation8 + $0x48] sm:$0xf]
          %v528 = vld [vmem:[#allocation8 + $0x4c] sm:$0xf]
          %v529 = vld [vmem:[#allocation8 + $0x50] sm:$0xf]
          %v530 = vld [vmem:[#allocation8 + $0x54] sm:$0xf]
          %v531 = vld [vmem:[#allocation8 + $0x58] sm:$0xf]
          %v532 = vld [vmem:[#allocation8 + $0x5c] sm:$0xf]
          %v533 = vld [vmem:[#allocation8 + $0x60] sm:$0xf]
          %v534 = vld [vmem:[#allocation8 + $0x64] sm:$0xf]
          %v535 = vld [vmem:[#allocation8 + $0x68] sm:$0xf]
          %v536 = vld [vmem:[#allocation8 + $0x6c] sm:$0xf]
          %v537 = vld [vmem:[#allocation8 + $0x70] sm:$0xf]
          %v538 = vld [vmem:[#allocation8 + $0x74] sm:$0xf]
          %v539 = vld [vmem:[#allocation8 + $0x78] sm:$0xf]
          %v540 = vld [vmem:[#allocation8 + $0x7c] sm:$0xf]
          %v541 = vld [vmem:[#allocation8 + $0x80] sm:$0xf]
          %v542 = vld [vmem:[#allocation8 + $0x84] sm:$0xf]
          %v543 = vld [vmem:[#allocation8 + $0x88] sm:$0xf]
          %v544 = vld [vmem:[#allocation8 + $0x8c] sm:$0xf]
          %v545 = vld [vmem:[#allocation8 + $0x90] sm:$0xf]
          %v546 = vld [vmem:[#allocation8 + $0x94] sm:$0xf]
          %v547 = vld [vmem:[#allocation8 + $0x98] sm:$0xf]
          %v548 = vld [vmem:[#allocation8 + $0x9c] sm:$0xf]
          %v549 = vld [vmem:[#allocation8 + $0xa0] sm:$0xf]
          %v550 = vld [vmem:[#allocation8 + $0xa4] sm:$0xf]
          %v551 = vld [vmem:[#allocation8 + $0xa8] sm:$0xf]
          %v552 = vld [vmem:[#allocation8 + $0xac] sm:$0xf]
          %v553 = vld [vmem:[#allocation8 + $0xb0] sm:$0xf]
          %v554 = vld [vmem:[#allocation8 + $0xb4] sm:$0xf]
          %v555 = vld [vmem:[#allocation8 + $0xb8] sm:$0xf]
          %v556 = vld [vmem:[#allocation8 + $0xbc] sm:$0xf]
          %v557 = vld [vmem:[#allocation8 + $0xc0] sm:$0xf]
          %v558 = vld [vmem:[#allocation8 + $0xc4] sm:$0xf]
          %v559 = vld [vmem:[#allocation8 + $0xc8] sm:$0xf]
          %v560 = vld [vmem:[#allocation8 + $0xcc] sm:$0xf]
          %v561 = vld [vmem:[#allocation8 + $0xd0] sm:$0xf]
          %v562 = vld [vmem:[#allocation8 + $0xd4] sm:$0xf]
          %v563 = vld [vmem:[#allocation8 + $0xd8] sm:$0xf]
          %v564 = vld [vmem:[#allocation8 + $0xdc] sm:$0xf]
          %v565 = vld [vmem:[#allocation8 + $0xe0] sm:$0xf]
          %v566 = vld [vmem:[#allocation8 + $0xe4] sm:$0xf]
          %v567 = vld [vmem:[#allocation8 + $0xe8] sm:$0xf]
          %v568 = vld [vmem:[#allocation8 + $0xec] sm:$0xf]
          %v569 = vld [vmem:[#allocation8 + $0xf0] sm:$0xf]
          %v570 = vld [vmem:[#allocation8 + $0xf4] sm:$0xf]
          %v571 = vld [vmem:[#allocation8 + $0xf8] sm:$0xf]
          %v572 = vld [vmem:[#allocation8 + $0xfc] sm:$0xf]
          %v573 = vld [vmem:[#allocation8 + $0x100] sm:$0xf]
          %v574 = vld [vmem:[#allocation8 + $0x104] sm:$0xf]
          %v575 = vld [vmem:[#allocation8 + $0x108] sm:$0xf]
          %v576 = vld [vmem:[#allocation8 + $0x10c] sm:$0xf]
          %v577 = vld [vmem:[#allocation8 + $0x110] sm:$0xf]
          %v578 = vld [vmem:[#allocation8 + $0x114] sm:$0xf]
          %v579 = vld [vmem:[#allocation8 + $0x118] sm:$0xf]
          %v580 = vld [vmem:[#allocation8 + $0x11c] sm:$0xf]
          %v587 = vunpack.c.l.b16 %v503
          %v588 = vunpack.c.h.b16 %v503
          %v589 = vunpack.c.l.b16 %v504
          %v590 = vunpack.c.h.b16 %v504
          %v591 = vunpack.c.l.b16 %v505
          %v592 = vunpack.c.l.b16 %v506
          %v593 = vunpack.c.h.b16 %v506
          %v594 = vunpack.c.l.b16 %v507
          %v595 = vunpack.c.h.b16 %v507
          %v596 = vunpack.c.l.b16 %v508
          %v597 = vpack.c.b16 %v592, %v587
          %v598 = vpack.c.b16 %v593, %v588
          %v599 = vpack.c.b16 %v594, %v589
          %v600 = vpack.c.b16 %v595, %v590
          %v601 = vpack.c.b16 %v596, %v591
          %v678 = vunpack.c.l.b16 %v509
          %v679 = vunpack.c.l.b16 %v510
          %v680 = vunpack.c.l.b16 %v511
          %v681 = vunpack.c.l.b16 %v512
          %v682 = vunpack.c.l.b16 %v513
          %v683 = vunpack.c.l.b16 %v514
          %v684 = vunpack.c.l.b16 %v515
          %v685 = vunpack.c.l.b16 %v516
          %v686 = vunpack.c.l.b16 %v517
          %v687 = vunpack.c.l.b16 %v518
          %v688 = vunpack.c.l.b16 %v519
          %v689 = vunpack.c.l.b16 %v520
          %v690 = vunpack.c.l.b16 %v521
          %v691 = vunpack.c.l.b16 %v522
          %v692 = vunpack.c.l.b16 %v523
          %v693 = vunpack.c.l.b16 %v524
          %v694 = vunpack.c.l.b16 %v525
          %v695 = vunpack.c.l.b16 %v526
          %v696 = vunpack.c.l.b16 %v527
          %v697 = vunpack.c.l.b16 %v528
          %v698 = vunpack.c.l.b16 %v529
          %v699 = vunpack.c.l.b16 %v530
          %v700 = vunpack.c.l.b16 %v531
          %v701 = vunpack.c.l.b16 %v532
          %v702 = vunpack.c.l.b16 %v533
          %v703 = vunpack.c.l.b16 %v534
          %v704 = vunpack.c.l.b16 %v535
          %v705 = vunpack.c.l.b16 %v536
          %v706 = vunpack.c.l.b16 %v537
          %v707 = vunpack.c.l.b16 %v538
          %v708 = vunpack.c.l.b16 %v539
          %v709 = vunpack.c.l.b16 %v540
          %v710 = vunpack.c.l.b16 %v541
          %v711 = vunpack.c.l.b16 %v542
          %v712 = vunpack.c.l.b16 %v543
          %v713 = vunpack.c.l.b16 %v544
          %v714 = vunpack.c.l.b16 %v545
          %v715 = vunpack.c.l.b16 %v546
          %v716 = vunpack.c.l.b16 %v547
          %v717 = vunpack.c.l.b16 %v548
          %v718 = vunpack.c.l.b16 %v549
          %v719 = vunpack.c.l.b16 %v550
          %v720 = vunpack.c.l.b16 %v551
          %v721 = vunpack.c.l.b16 %v552
          %v722 = vunpack.c.l.b16 %v553
          %v723 = vunpack.c.l.b16 %v554
          %v724 = vunpack.c.l.b16 %v555
          %v725 = vunpack.c.l.b16 %v556
          %v726 = vunpack.c.l.b16 %v557
          %v727 = vunpack.c.l.b16 %v558
          %v728 = vunpack.c.l.b16 %v559
          %v729 = vunpack.c.l.b16 %v560
          %v730 = vunpack.c.l.b16 %v561
          %v731 = vunpack.c.l.b16 %v562
          %v732 = vunpack.c.l.b16 %v563
          %v733 = vunpack.c.l.b16 %v564
          %v734 = vunpack.c.l.b16 %v565
          %v735 = vunpack.c.l.b16 %v566
          %v736 = vunpack.c.l.b16 %v567
          %v737 = vunpack.c.l.b16 %v568
          %v738 = vunpack.c.l.b16 %v569
          %v739 = vunpack.c.l.b16 %v570
          %v740 = vunpack.c.l.b16 %v571
          %v741 = vunpack.c.l.b16 %v572
          %v742 = vunpack.c.l.b16 %v573
          %v743 = vunpack.c.l.b16 %v574
          %v744 = vunpack.c.l.b16 %v575
          %v745 = vunpack.c.l.b16 %v576
          %v746 = vunpack.c.l.b16 %v577
          %v747 = vunpack.c.l.b16 %v578
          %v748 = vunpack.c.l.b16 %v579
          %v749 = vunpack.c.l.b16 %v580
          %v750 = vpack.c.b16 %v679, %v678
          %v751 = vpack.c.b16 %v681, %v680
          %v752 = vpack.c.b16 %v683, %v682
          %v753 = vpack.c.b16 %v685, %v684
          %v754 = vpack.c.b16 %v687, %v686
          %v755 = vpack.c.b16 %v689, %v688
          %v756 = vpack.c.b16 %v691, %v690
          %v757 = vpack.c.b16 %v693, %v692
          %v758 = vpack.c.b16 %v695, %v694
          %v759 = vpack.c.b16 %v697, %v696
          %v760 = vpack.c.b16 %v699, %v698
          %v761 = vpack.c.b16 %v701, %v700
          %v762 = vpack.c.b16 %v703, %v702
          %v763 = vpack.c.b16 %v705, %v704
          %v764 = vpack.c.b16 %v707, %v706
          %v765 = vpack.c.b16 %v709, %v708
          %v766 = vpack.c.b16 %v711, %v710
          %v767 = vpack.c.b16 %v713, %v712
          %v768 = vpack.c.b16 %v715, %v714
          %v769 = vpack.c.b16 %v717, %v716
          %v770 = vpack.c.b16 %v719, %v718
          %v771 = vpack.c.b16 %v721, %v720
          %v772 = vpack.c.b16 %v723, %v722
          %v773 = vpack.c.b16 %v725, %v724
          %v774 = vpack.c.b16 %v727, %v726
          %v775 = vpack.c.b16 %v729, %v728
          %v776 = vpack.c.b16 %v731, %v730
          %v777 = vpack.c.b16 %v733, %v732
          %v778 = vpack.c.b16 %v735, %v734
          %v779 = vpack.c.b16 %v737, %v736
          %v780 = vpack.c.b16 %v739, %v738
          %v781 = vpack.c.b16 %v741, %v740
          %v782 = vpack.c.b16 %v743, %v742
          %v783 = vpack.c.b16 %v745, %v744
          %v784 = vpack.c.b16 %v747, %v746
          %v785 = vpack.c.b16 %v749, %v748
          %vm822 = vcmask 523264
          %v824 = vsel %vm822, %v601, 0
          %826 = vmatpush.bf16.msra.mxu0 %v757
          %827 = vmatpush.bf16.msra.mxu0 %v756
          %828 = vmatpush.bf16.msra.mxu0 %v755
          %829 = vmatpush.bf16.msra.mxu0 %v754
          %830 = vmatpush.bf16.msra.mxu0 %v753
          %831 = vmatpush.bf16.msra.mxu0 %v752
          %832 = vmatpush.bf16.msra.mxu0 %v751
          %833 = vmatpush.bf16.msra.mxu0 %v750
          %834 = vmatmul.bf16.gmra.mxu0 %v597
          %v835 = vpop.f32.mrf.mxu0
          %v836 = vadd.f32 0.0, %v835
          %v837 = vpop.f32.mrf.mxu0
          %v838 = vadd.f32 0.0, %v837
          %839 = vdwg.mxu0
          %840 = vmatpush.bf16.msra.mxu0 %v765
          %841 = vmatpush.bf16.msra.mxu0 %v764
          %842 = vmatpush.bf16.msra.mxu0 %v763
          %843 = vmatpush.bf16.msra.mxu0 %v762
          %844 = vmatpush.bf16.msra.mxu0 %v761
          %845 = vmatpush.bf16.msra.mxu0 %v760
          %846 = vmatpush.bf16.msra.mxu0 %v759
          %847 = vmatpush.bf16.msra.mxu0 %v758
          %848 = vmatmul.bf16.gmra.mxu0 %v598
          %v849 = vpop.f32.mrf.mxu0
          %v850 = vadd.f32 %v836, %v849
          %v851 = vpop.f32.mrf.mxu0
          %v852 = vadd.f32 %v838, %v851
          %853 = vdwg.mxu0
          %854 = vmatpush.bf16.msra.mxu0 %v773
          %855 = vmatpush.bf16.msra.mxu0 %v772
          %856 = vmatpush.bf16.msra.mxu0 %v771
          %857 = vmatpush.bf16.msra.mxu0 %v770
          %858 = vmatpush.bf16.msra.mxu0 %v769
          %859 = vmatpush.bf16.msra.mxu0 %v768
          %860 = vmatpush.bf16.msra.mxu0 %v767
          %861 = vmatpush.bf16.msra.mxu0 %v766
          %862 = vmatmul.bf16.gmra.mxu0 %v599
          %v863 = vpop.f32.mrf.mxu0
          %v864 = vadd.f32 %v850, %v863
          %v865 = vpop.f32.mrf.mxu0
          %v866 = vadd.f32 %v852, %v865
          %867 = vdwg.mxu0
          %868 = vmatpush.bf16.msra.mxu0 %v781
          %869 = vmatpush.bf16.msra.mxu0 %v780
          %870 = vmatpush.bf16.msra.mxu0 %v779
          %871 = vmatpush.bf16.msra.mxu0 %v778
          %872 = vmatpush.bf16.msra.mxu0 %v777
          %873 = vmatpush.bf16.msra.mxu0 %v776
          %874 = vmatpush.bf16.msra.mxu0 %v775
          %875 = vmatpush.bf16.msra.mxu0 %v774
          %876 = vmatmul.bf16.gmra.mxu0 %v600
          %v877 = vpop.f32.mrf.mxu0
          %v878 = vadd.f32 %v864, %v877
          %v879 = vpop.f32.mrf.mxu0
          %v880 = vadd.f32 %v866, %v879
          %881 = vdwg.mxu0
          %882 = vmatpush.bf16.msra.mxu0 0
          %883 = vmatpush.bf16.msra.mxu0 0
          %884 = vmatpush.bf16.msra.mxu0 0
          %885 = vmatpush.bf16.msra.mxu0 0
          %886 = vmatpush.bf16.msra.mxu0 %v785
          %887 = vmatpush.bf16.msra.mxu0 %v784
          %888 = vmatpush.bf16.msra.mxu0 %v783
          %889 = vmatpush.bf16.msra.mxu0 %v782
          %890 = vmatmul.bf16.gmra.mxu0 %v824
          %v891 = vpop.f32.mrf.mxu0
          %v892 = vadd.f32 %v878, %v891
          %v893 = vpop.f32.mrf.mxu0
          %v894 = vadd.f32 %v880, %v893
          %895 = vdwg.mxu0
          %s896 = smul.u32 %s29, 16
          %s897 = scalar_lea.vmem [#allocation2], %s896
          %898 = vst [vmem:[%s897] sm:$0xff] %v892
          %899 = vst [vmem:[%s897 + $0x8] sm:$0xff] %v894
          %v900 = vadd.f32 %v892, %v894
          %v901 = vrot.slane %v900, 4
          %v902 = vadd.f32 %v900, %v901
          %v903 = vrot.slane %v902, 2
          %v904 = vadd.f32 %v902, %v903
          %v905 = vrot.slane %v904, 1
          %v906 = vadd.f32 %v904, %v905
          %v907 = vmul.f32 %v892, %v892
          %v908 = vmul.f32 %v894, %v894
          %v909 = vadd.f32 %v907, %v908
          %v910 = vrot.slane %v909, 4
          %v911 = vadd.f32 %v909, %v910
          %v912 = vrot.slane %v911, 2
          %v913 = vadd.f32 %v911, %v912
          %v914 = vrot.slane %v913, 1
          %v915 = vadd.f32 %v913, %v914
          %vm916 = vcmask 1040384
          %v917 = vsel %vm916, %v906, %v915
          %v918 = vld [vmem:[#allocation3] sm:$0x3]
          %v919 = vld [vmem:[%s6] sm:$0xff]
          %v920 = vld [vmem:[%s6 + $0x8] sm:$0xff]
          %v921 = vld [vmem:[%s6 + $0x10] sm:$0xff]
          %v922 = vld [vmem:[%s6 + $0x18] sm:$0xff]
          %v923 = vld [vmem:[%s6 + $0x20] sm:$0xff]
          %v924 = vld [vmem:[%s6 + $0x28] sm:$0xff]
          %v925 = vld [vmem:[%s6 + $0x30] sm:$0xff]
          %v926 = vld [vmem:[%s6 + $0x38] sm:$0xff]
          %v927 = vld [vmem:[%s6 + $0x40] sm:$0xff]
          %v928 = vld [vmem:[%s6 + $0x48] sm:$0xff]
          %v929 = vld [vmem:[%s6 + $0x50] sm:$0xff]
          %v930 = vld [vmem:[%s6 + $0x58] sm:$0xff]
          %v931 = vld [vmem:[%s6 + $0x60] sm:$0xff]
          %v932 = vld [vmem:[%s6 + $0x68] sm:$0xff]
          %v933 = vld [vmem:[%s6 + $0x70] sm:$0xff]
          %v934 = vld [vmem:[%s6 + $0x78] sm:$0xff]
          %935 = vmatpush.msra.mxu0 %v934
          %936 = vmatpush.msra.mxu0 %v933
          %937 = vmatpush.msra.mxu0 %v932
          %938 = vmatpush.msra.mxu0 %v931
          %939 = vmatpush.msra.mxu0 %v930
          %940 = vmatpush.msra.mxu0 %v929
          %941 = vmatpush.msra.mxu0 %v928
          %942 = vmatpush.msra.mxu0 %v927
          %943 = vmatpush.msra.mxu0 %v926
          %944 = vmatpush.msra.mxu0 %v925
          %945 = vmatpush.msra.mxu0 %v924
          %946 = vmatpush.msra.mxu0 %v923
          %947 = vmatpush.msra.mxu0 %v922
          %948 = vmatpush.msra.mxu0 %v921
          %949 = vmatpush.msra.mxu0 %v920
          %950 = vmatpush.msra.mxu0 %v919
          %951 = vmatmul.f32.gmra.mxu0 %v917
          %v952 = vpop.f32.mrf.mxu0
          %v953 = vadd.f32 0.0, %v952
          %954 = vdwg.mxu0
          %v955 = vadd.f32 %v918, %v953
          %vm956 = vcmask 58368
          %957 = vst.msk [vmem:[#allocation3] sm:$0x3] %vm956, %v955
        $region68: #{tpu_custom_call.1} parent=51 // pred_fallthru
          _
        %p958 = scmp.eq.s32.totalorder %s28, 1
        // Predicated region
        $region69: #{tpu_custom_call.1} parent=51 // pred_check
          %p959 = pneg %p958
        $region70: #{tpu_custom_call.1} parent=51 // pred_check_branch
          %961 = sbr.rel (%p959) target = $region72
        $region71: #{tpu_custom_call.1} parent=51 // pred_region
          %v962 = vld [vmem:[#allocation3] sm:$0x1]
          %v963 = vrcp.pop 512.0
          %v964 = vmul.f32 512.0, %v963
          %v965 = vsub.f32 1.0, %v964
          %v966 = vmul.f32 %v963, %v965
          %v967 = vadd.f32 %v963, %v966
          %vm968 = vweird.f32 %v963
          %v969 = vsel %vm968, %v963, %v967
          %v970 = vmul.f32 %v962, %v969
          %v971 = vld [vmem:[#allocation3 + $0x1] sm:$0x1]
          %v972 = vmul.f32 %v971, %v969
          %v973 = vmul.f32 %v970, %v970
          %v974 = vsub.f32 %v972, %v973
          %v975 = vld [vmem:[%s4] sm:$0x1]
          %v976 = vadd.f32 %v974, 1e-05
          %v977 = vrsqrt.pop %v976
          %v978 = vmul.f32 %v977, %v976
          %v979 = vmul.f32 %v978, %v977
          %v980 = vmul.f32 0.5, %v979
          %v981 = vsub.f32 1.5, %v980
          %v982 = vmul.f32 %v977, %v981
          %vm983 = vweird.f32 %v976
          %vm984 = vweird.f32 %v977
          %vm985 = vmor %vm983, %vm984
          %v986 = vsel %vm985, %v977, %v982
          %v987 = vmul.f32 %v975, %v986
          %v988 = vld [vmem:[%s5] sm:$0x1]
          %v989 = vmul.f32 %v970, %v987
          %v990 = vsub.f32 %v988, %v989
          %v992 = vperm.slane %v990, 0
          %vm994 = vcmask 1040384
          %v995 = vsel %vm994, %v987, %v992
          %v996 = vld [vmem:[%s7] sm:$0xff]
          %vm997 = vcmask 64512
          %v999 = vsel %vm997, %v995, 0
          %1001 = vmatpush.msra.mxu0 0.0
          %1002 = vmatpush.msra.mxu0 0.0
          %1003 = vmatpush.msra.mxu0 0.0
          %1004 = vmatpush.msra.mxu0 0.0
          %1005 = vmatpush.msra.mxu0 0.0
          %1006 = vmatpush.msra.mxu0 0.0
          %1007 = vmatpush.msra.mxu0 0.0
          %1008 = vmatpush.msra.mxu0 0.0
          %1009 = vmatpush.msra.mxu0 0.0
          %1010 = vmatpush.msra.mxu0 0.0
          %1011 = vmatpush.msra.mxu0 0.0
          %1012 = vmatpush.msra.mxu0 0.0
          %1013 = vmatpush.msra.mxu0 0.0
          %1014 = vmatpush.msra.mxu0 0.0
          %1015 = vmatpush.msra.mxu0 0.0
          %1016 = vmatpush.msra.mxu0 %v996
          %1017 = vmatmul.f32.gmra.mxu0 %v999
          %v1018 = vpop.f32.mrf.mxu0
          %v1019 = vadd.f32 0.0, %v1018
          %1020 = vdwg.mxu0
          %s1021 = smul.u32 %s29, 16
          %s1022 = scalar_lea.vmem [#allocation2], %s1021
          %v1023 = vld [vmem:[%s1022] sm:$0xff]
          %v1024 = vld [vmem:[%s1022 + $0x8] sm:$0xff]
          %v1025 = vperm.slane %v1019, 0
          %v1026 = vmul.f32 %v1023, %v1025
          %v1027 = vmul.f32 %v1024, %v1025
          %v1028 = vperm.slane %v1019, 1
          %v1029 = vadd.f32 %v1026, %v1028
          %v1030 = vadd.f32 %v1027, %v1028
          %v1031 = vmax.f32 %v1029, 0.0
          %v1032 = vmax.f32 %v1030, 0.0
          %v1035 = vrot.slane %v1031, 7
          %v1036 = vrot.slane %v1032, 7
          %v1037 = vsel %vm994, %v1035, %v1036
          %1038 = vrot.lane.b32.xlu0 %v1035, 8
          %v1039 = vpop.permute.xlu0 %1038
          %1040 = vrot.lane.b32.xlu0 %v1037, 8
          %v1041 = vpop.permute.xlu0 %1040
          %1042 = vrot.lane.b32.xlu0 %v1036, 8
          %v1043 = vpop.permute.xlu0 %1042
          %vm1047 = vcmask 1047617
          %1048 = vst.msk [vmem:[#allocation5] sm:$0xfe] %vm1047, %v1039
          %vm1049 = vcmask 64513
          %1050 = vst.msk [vmem:[#allocation5 + $0x8] sm:$0xfe] %vm1049, %v1039
          %vm1051 = vcmask 1047616
          %1052 = vst.msk [vmem:[#allocation5 + $0x10] sm:$0xff] %vm1051, %v1041
          %1053 = vst.msk [vmem:[#allocation5 + $0x18] sm:$0xff] %vm997, %v1041
          %vm1054 = vcmask 1040448
          %1055 = vst.msk [vmem:[#allocation5 + $0x20] sm:$0x1] %vm1054, %v1043
          %vm1056 = vcmask 57344
          %1057 = vst.msk [vmem:[#allocation5 + $0x28] sm:$0x1] %vm1056, %v1043
          %v1058 = vld [vmem:[#allocation5] sm:$0xff]
          %v1059 = vld [vmem:[#allocation5 + $0x10] sm:$0xff]
          %v1060 = vpack.c.bf16 %v1058, %v1058
          %v1061 = vpack.c.bf16 %v1059, %v1059
          %1062 = vst [vmem:[#allocation7] sm:$0xf] %v1060
          %1063 = vst [vmem:[#allocation7 + $0x28] sm:$0xf] %v1061
          %v1064 = vld [vmem:[#allocation5] sm:$0xff]
          %v1065 = vld [vmem:[#allocation5 + $0x8] sm:$0xff]
          %v1066 = vld [vmem:[#allocation5 + $0x10] sm:$0xff]
          %v1067 = vld [vmem:[#allocation5 + $0x18] sm:$0xff]
          %v1068 = vpack.c.bf16 %v1065, %v1064
          %v1069 = vpack.c.bf16 %v1067, %v1066
          %1072 = vrot.lane.b32.xlu0 %v1068, 120
          %v1073 = vpop.permute.xlu0 %1072
          %1074 = vrot.lane.b32.xlu0 %v1069, 120
          %v1075 = vpop.permute.xlu0 %1074
          %v1076 = vrot.slane %v1073, 4
          %v1077 = vrot.slane %v1075, 4
          %vm1078 = vcmask 982016
          %v1079 = vsel %vm1078, %v1073, %v1076
          %v1080 = vsel %vm1078, %v1075, %v1077
          %1083 = vst [vmem:[#allocation7 + $0x4] sm:$0xf] %v1079
          %1084 = vst [vmem:[#allocation7 + $0x2c] sm:$0xf] %v1080
          %v1085 = vld [vmem:[#allocation5] sm:$0xff]
          %v1086 = vld [vmem:[#allocation5 + $0x8] sm:$0xff]
          %v1087 = vld [vmem:[#allocation5 + $0x10] sm:$0xff]
          %v1088 = vld [vmem:[#allocation5 + $0x18] sm:$0xff]
          %v1089 = vpack.c.bf16 %v1086, %v1085
          %v1090 = vpack.c.bf16 %v1088, %v1087
          %1093 = vrot.lane.b32.xlu0 %v1089, 112
          %v1094 = vpop.permute.xlu0 %1093
          %1095 = vrot.lane.b32.xlu0 %v1090, 112
          %v1096 = vpop.permute.xlu0 %1095
          %v1097 = vrot.slane %v1094, 4
          %v1098 = vrot.slane %v1096, 4
          %vm1099 = vcmask 916480
          %v1100 = vsel %vm1099, %v1094, %v1097
          %v1101 = vsel %vm1099, %v1096, %v1098
          %1104 = vst [vmem:[#allocation7 + $0x8] sm:$0xf] %v1100
          %1105 = vst [vmem:[#allocation7 + $0x30] sm:$0xf] %v1101
          %v1106 = vld [vmem:[#allocation5] sm:$0xfe]
          %v1107 = vld [vmem:[#allocation5 + $0x10] sm:$0xff]
          %v1108 = vld [vmem:[#allocation5 + $0x20] sm:$0x1]
          %v1109 = vpack.c.bf16 %v1106, %v1106
          %v1110 = vpack.c.bf16 %v1107, %v1107
          %v1111 = vpack.c.bf16 %v1108, %v1108
          %vm1112 = vsmask.f32 3328
          %vm1113 = vsmask.f32 7440
          %vm1114 = vmor %vm1112, %vm1113
          %v1116 = vshrl.u32 %v1109, 16
          %v1118 = vrot.slane %v1116, 4
          %v1119 = vshll.u32 %v1109, 16
          %v1121 = vrot.slane %v1119, 5
          %v1122 = vor.u32 %v1118, %v1121
          %v1123 = vrot.slane %v1122, 4
          %v1125 = vshll.u32 %v1110, 16
          %v1127 = vrot.slane %v1125, 5
          %v1128 = vsel %vm1114, %v1123, %v1127
          %v1129 = vshrl.u32 %v1110, 16
          %v1131 = vrot.slane %v1129, 4
          %v1132 = vor.u32 %v1131, %v1127
          %v1133 = vrot.slane %v1132, 4
          %v1135 = vshll.u32 %v1111, 16
          %v1137 = vrot.slane %v1135, 5
          %v1138 = vsel %vm1114, %v1133, %v1137
          %1141 = vst [vmem:[#allocation7 + $0xc] sm:$0xf] %v1128
          %1142 = vst [vmem:[#allocation7 + $0x34] sm:$0xf] %v1138
          %v1143 = vld [vmem:[#allocation5] sm:$0xfe]
          %v1144 = vld [vmem:[#allocation5 + $0x8] sm:$0xfe]
          %v1145 = vld [vmem:[#allocation5 + $0x10] sm:$0xff]
          %v1146 = vld [vmem:[#allocation5 + $0x18] sm:$0xff]
          %v1147 = vld [vmem:[#allocation5 + $0x20] sm:$0x1]
          %v1148 = vld [vmem:[#allocation5 + $0x28] sm:$0x1]
          %v1149 = vpack.c.bf16 %v1144, %v1143
          %v1150 = vpack.c.bf16 %v1146, %v1145
          %v1151 = vpack.c.bf16 %v1148, %v1147
          %v1153 = vshrl.u32 %v1149, 16
          %v1155 = vrot.slane %v1153, 4
          %v1156 = vshll.u32 %v1149, 16
          %v1158 = vrot.slane %v1156, 5
          %v1159 = vor.u32 %v1155, %v1158
          %v1160 = vrot.slane %v1159, 4
          %v1162 = vshll.u32 %v1150, 16
          %v1164 = vrot.slane %v1162, 5
          %v1165 = vsel %vm1114, %v1160, %v1164
          %v1166 = vshrl.u32 %v1150, 16
          %v1168 = vrot.slane %v1166, 4
          %v1169 = vor.u32 %v1168, %v1164
          %v1170 = vrot.slane %v1169, 4
          %v1172 = vshll.u32 %v1151, 16
          %v1174 = vrot.slane %v1172, 5
          %v1175 = vsel %vm1114, %v1170, %v1174
          %1176 = vrot.lane.b32.xlu0 %v1165, 120
          %v1177 = vpop.permute.xlu0 %1176
          %1178 = vrot.lane.b32.xlu0 %v1175, 120
          %v1179 = vpop.permute.xlu0 %1178
          %v1180 = vrot.slane %v1177, 4
          %v1181 = vrot.slane %v1179, 4
          %v1182 = vsel %vm1078, %v1177, %v1180
          %v1183 = vsel %vm1078, %v1179, %v1181
          %1186 = vst [vmem:[#allocation7 + $0x10] sm:$0xf] %v1182
          %1187 = vst [vmem:[#allocation7 + $0x38] sm:$0xf] %v1183
          %v1188 = vld [vmem:[#allocation5] sm:$0xfe]
          %v1189 = vld [vmem:[#allocation5 + $0x8] sm:$0xfe]
          %v1190 = vld [vmem:[#allocation5 + $0x10] sm:$0xff]
          %v1191 = vld [vmem:[#allocation5 + $0x18] sm:$0xff]
          %v1192 = vld [vmem:[#allocation5 + $0x20] sm:$0x1]
          %v1193 = vld [vmem:[#allocation5 + $0x28] sm:$0x1]
          %v1194 = vpack.c.bf16 %v1189, %v1188
          %v1195 = vpack.c.bf16 %v1191, %v1190
          %v1196 = vpack.c.bf16 %v1193, %v1192
          %v1198 = vshrl.u32 %v1194, 16
          %v1200 = vrot.slane %v1198, 4
          %v1201 = vshll.u32 %v1194, 16
          %v1203 = vrot.slane %v1201, 5
          %v1204 = vor.u32 %v1200, %v1203
          %v1205 = vrot.slane %v1204, 4
          %v1207 = vshll.u32 %v1195, 16
          %v1209 = vrot.slane %v1207, 5
          %v1210 = vsel %vm1114, %v1205, %v1209
          %v1211 = vshrl.u32 %v1195, 16
          %v1213 = vrot.slane %v1211, 4
          %v1214 = vor.u32 %v1213, %v1209
          %v1215 = vrot.slane %v1214, 4
          %v1217 = vshll.u32 %v1196, 16
          %v1219 = vrot.slane %v1217, 5
          %v1220 = vsel %vm1114, %v1215, %v1219
          %1221 = vrot.lane.b32.xlu0 %v1210, 112
          %v1222 = vpop.permute.xlu0 %1221
          %1223 = vrot.lane.b32.xlu0 %v1220, 112
          %v1224 = vpop.permute.xlu0 %1223
          %v1225 = vrot.slane %v1222, 4
          %v1226 = vrot.slane %v1224, 4
          %v1227 = vsel %vm1099, %v1222, %v1225
          %v1228 = vsel %vm1099, %v1224, %v1226
          %1231 = vst [vmem:[#allocation7 + $0x14] sm:$0xf] %v1227
          %1232 = vst [vmem:[#allocation7 + $0x3c] sm:$0xf] %v1228
          %v1233 = vld [vmem:[#allocation5] sm:$0xfc]
          %v1234 = vld [vmem:[#allocation5 + $0x10] sm:$0xff]
          %v1235 = vld [vmem:[#allocation5 + $0x20] sm:$0x3]
          %v1236 = vpack.c.bf16 %v1233, %v1233
          %v1237 = vpack.c.bf16 %v1234, %v1234
          %v1238 = vpack.c.bf16 %v1235, %v1235
          %vm1242 = vcmask 1042432
          %vm1243 = vcmask 1046532
          %vm1244 = vmor %vm1242, %vm1243
          %v1245 = vrot.slane %v1236, 5
          %v1246 = vrot.slane %v1245, 4
          %v1247 = vrot.slane %v1237, 5
          %v1248 = vsel %vm1244, %v1246, %v1247
          %v1249 = vrot.slane %v1247, 4
          %v1250 = vrot.slane %v1238, 5
          %v1251 = vsel %vm1244, %v1249, %v1250
          %1254 = vst [vmem:[#allocation7 + $0x18] sm:$0xf] %v1248
          %1255 = vst [vmem:[#allocation7 + $0x40] sm:$0xf] %v1251
          %v1256 = vld [vmem:[#allocation5] sm:$0xfc]
          %v1257 = vld [vmem:[#allocation5 + $0x8] sm:$0xfc]
          %v1258 = vld [vmem:[#allocation5 + $0x10] sm:$0xff]
          %v1259 = vld [vmem:[#allocation5 + $0x18] sm:$0xff]
          %v1260 = vld [vmem:[#allocation5 + $0x20] sm:$0x3]
          %v1261 = vld [vmem:[#allocation5 + $0x28] sm:$0x3]
          %v1262 = vpack.c.bf16 %v1257, %v1256
          %v1263 = vpack.c.bf16 %v1259, %v1258
          %v1264 = vpack.c.bf16 %v1261, %v1260
          %v1268 = vrot.slane %v1262, 5
          %v1269 = vrot.slane %v1268, 4
          %v1270 = vrot.slane %v1263, 5
          %v1271 = vsel %vm1244, %v1269, %v1270
          %v1272 = vrot.slane %v1270, 4
          %v1273 = vrot.slane %v1264, 5
          %v1274 = vsel %vm1244, %v1272, %v1273
          %1275 = vrot.lane.b32.xlu0 %v1271, 120
          %v1276 = vpop.permute.xlu0 %1275
          %1277 = vrot.lane.b32.xlu0 %v1274, 120
          %v1278 = vpop.permute.xlu0 %1277
          %v1279 = vrot.slane %v1276, 4
          %v1280 = vrot.slane %v1278, 4
          %v1281 = vsel %vm1078, %v1276, %v1279
          %v1282 = vsel %vm1078, %v1278, %v1280
          %1285 = vst [vmem:[#allocation7 + $0x1c] sm:$0xf] %v1281
          %1286 = vst [vmem:[#allocation7 + $0x44] sm:$0xf] %v1282
          %v1287 = vld [vmem:[#allocation5] sm:$0xfc]
          %v1288 = vld [vmem:[#allocation5 + $0x8] sm:$0xfc]
          %v1289 = vld [vmem:[#allocation5 + $0x10] sm:$0xff]
          %v1290 = vld [vmem:[#allocation5 + $0x18] sm:$0xff]
          %v1291 = vld [vmem:[#allocation5 + $0x20] sm:$0x3]
          %v1292 = vld [vmem:[#allocation5 + $0x28] sm:$0x3]
          %v1293 = vpack.c.bf16 %v1288, %v1287
          %v1294 = vpack.c.bf16 %v1290, %v1289
          %v1295 = vpack.c.bf16 %v1292, %v1291
          %v1299 = vrot.slane %v1293, 5
          %v1300 = vrot.slane %v1299, 4
          %v1301 = vrot.slane %v1294, 5
          %v1302 = vsel %vm1244, %v1300, %v1301
          %v1303 = vrot.slane %v1301, 4
          %v1304 = vrot.slane %v1295, 5
          %v1305 = vsel %vm1244, %v1303, %v1304
          %1306 = vrot.lane.b32.xlu0 %v1302, 112
          %v1307 = vpop.permute.xlu0 %1306
          %1308 = vrot.lane.b32.xlu0 %v1305, 112
          %v1309 = vpop.permute.xlu0 %1308
          %v1310 = vrot.slane %v1307, 4
          %v1311 = vrot.slane %v1309, 4
          %v1312 = vsel %vm1099, %v1307, %v1310
          %v1313 = vsel %vm1099, %v1309, %v1311
          %1316 = vst [vmem:[#allocation7 + $0x20] sm:$0xf] %v1312
          %1317 = vst [vmem:[#allocation7 + $0x48] sm:$0xf] %v1313
          %v1318 = vld [vmem:[%s351] sm:$0xff]
          %v1319 = vld [vmem:[%s351 + $0x8] sm:$0xff]
          %v1320 = vpack.c.bf16 %v1318, %v1318
          %v1321 = vpack.c.bf16 %v1319, %v1319
          %vm1322 = vcmask 519168
          %1323 = vst.msk [vmem:[#allocation7 + $0x24] sm:$0xf] %vm1322, %v1320
          %1324 = vst.msk [vmem:[#allocation7 + $0x4c] sm:$0xf] %vm1322, %v1321
          %v1325 = vld [vmem:[#allocation7] sm:$0xff]
          %v1326 = vld [vmem:[#allocation7 + $0x8] sm:$0xff]
          %v1327 = vld [vmem:[#allocation7 + $0x10] sm:$0xff]
          %v1328 = vld [vmem:[#allocation7 + $0x18] sm:$0xff]
          %v1329 = vld [vmem:[#allocation7 + $0x20] sm:$0xff]
          %v1330 = vld [vmem:[#allocation7 + $0x28] sm:$0xff]
          %v1331 = vld [vmem:[#allocation7 + $0x30] sm:$0xff]
          %v1332 = vld [vmem:[#allocation7 + $0x38] sm:$0xff]
          %v1333 = vld [vmem:[#allocation7 + $0x40] sm:$0xff]
          %v1334 = vld [vmem:[#allocation7 + $0x48] sm:$0xff]
          %v1335 = vld [vmem:[#allocation11] sm:$0xf]
          %v1336 = vld [vmem:[#allocation11 + $0x4] sm:$0xf]
          %v1337 = vld [vmem:[#allocation11 + $0x8] sm:$0xf]
          %v1338 = vld [vmem:[#allocation11 + $0xc] sm:$0xf]
          %v1339 = vld [vmem:[#allocation11 + $0x10] sm:$0xf]
          %v1340 = vld [vmem:[#allocation11 + $0x14] sm:$0xf]
          %v1341 = vld [vmem:[#allocation11 + $0x18] sm:$0xf]
          %v1342 = vld [vmem:[#allocation11 + $0x1c] sm:$0xf]
          %v1343 = vld [vmem:[#allocation11 + $0x20] sm:$0xf]
          %v1344 = vld [vmem:[#allocation11 + $0x24] sm:$0xf]
          %v1345 = vld [vmem:[#allocation11 + $0x28] sm:$0xf]
          %v1346 = vld [vmem:[#allocation11 + $0x2c] sm:$0xf]
          %v1347 = vld [vmem:[#allocation11 + $0x30] sm:$0xf]
          %v1348 = vld [vmem:[#allocation11 + $0x34] sm:$0xf]
          %v1349 = vld [vmem:[#allocation11 + $0x38] sm:$0xf]
          %v1350 = vld [vmem:[#allocation11 + $0x3c] sm:$0xf]
          %v1351 = vld [vmem:[#allocation11 + $0x40] sm:$0xf]
          %v1352 = vld [vmem:[#allocation11 + $0x44] sm:$0xf]
          %v1353 = vld [vmem:[#allocation11 + $0x48] sm:$0xf]
          %v1354 = vld [vmem:[#allocation11 + $0x4c] sm:$0xf]
          %v1355 = vld [vmem:[#allocation11 + $0x50] sm:$0xf]
          %v1356 = vld [vmem:[#allocation11 + $0x54] sm:$0xf]
          %v1357 = vld [vmem:[#allocation11 + $0x58] sm:$0xf]
          %v1358 = vld [vmem:[#allocation11 + $0x5c] sm:$0xf]
          %v1359 = vld [vmem:[#allocation11 + $0x60] sm:$0xf]
          %v1360 = vld [vmem:[#allocation11 + $0x64] sm:$0xf]
          %v1361 = vld [vmem:[#allocation11 + $0x68] sm:$0xf]
          %v1362 = vld [vmem:[#allocation11 + $0x6c] sm:$0xf]
          %v1363 = vld [vmem:[#allocation11 + $0x70] sm:$0xf]
          %v1364 = vld [vmem:[#allocation11 + $0x74] sm:$0xf]
          %v1365 = vld [vmem:[#allocation11 + $0x78] sm:$0xf]
          %v1366 = vld [vmem:[#allocation11 + $0x7c] sm:$0xf]
          %v1367 = vld [vmem:[#allocation11 + $0x80] sm:$0xf]
          %v1368 = vld [vmem:[#allocation11 + $0x84] sm:$0xf]
          %v1369 = vld [vmem:[#allocation11 + $0x88] sm:$0xf]
          %v1370 = vld [vmem:[#allocation11 + $0x8c] sm:$0xf]
          %v1371 = vld [vmem:[#allocation11 + $0x90] sm:$0xf]
          %v1372 = vld [vmem:[#allocation11 + $0x94] sm:$0xf]
          %v1373 = vld [vmem:[#allocation11 + $0x98] sm:$0xf]
          %v1374 = vld [vmem:[#allocation11 + $0x9c] sm:$0xf]
          %v1375 = vld [vmem:[#allocation11 + $0xa0] sm:$0xf]
          %v1376 = vld [vmem:[#allocation11 + $0xa4] sm:$0xf]
          %v1377 = vld [vmem:[#allocation11 + $0xa8] sm:$0xf]
          %v1378 = vld [vmem:[#allocation11 + $0xac] sm:$0xf]
          %v1379 = vld [vmem:[#allocation11 + $0xb0] sm:$0xf]
          %v1380 = vld [vmem:[#allocation11 + $0xb4] sm:$0xf]
          %v1381 = vld [vmem:[#allocation11 + $0xb8] sm:$0xf]
          %v1382 = vld [vmem:[#allocation11 + $0xbc] sm:$0xf]
          %v1383 = vld [vmem:[#allocation11 + $0xc0] sm:$0xf]
          %v1384 = vld [vmem:[#allocation11 + $0xc4] sm:$0xf]
          %v1385 = vld [vmem:[#allocation11 + $0xc8] sm:$0xf]
          %v1386 = vld [vmem:[#allocation11 + $0xcc] sm:$0xf]
          %v1387 = vld [vmem:[#allocation11 + $0xd0] sm:$0xf]
          %v1388 = vld [vmem:[#allocation11 + $0xd4] sm:$0xf]
          %v1389 = vld [vmem:[#allocation11 + $0xd8] sm:$0xf]
          %v1390 = vld [vmem:[#allocation11 + $0xdc] sm:$0xf]
          %v1391 = vld [vmem:[#allocation11 + $0xe0] sm:$0xf]
          %v1392 = vld [vmem:[#allocation11 + $0xe4] sm:$0xf]
          %v1393 = vld [vmem:[#allocation11 + $0xe8] sm:$0xf]
          %v1394 = vld [vmem:[#allocation11 + $0xec] sm:$0xf]
          %v1395 = vld [vmem:[#allocation11 + $0xf0] sm:$0xf]
          %v1396 = vld [vmem:[#allocation11 + $0xf4] sm:$0xf]
          %v1397 = vld [vmem:[#allocation11 + $0xf8] sm:$0xf]
          %v1398 = vld [vmem:[#allocation11 + $0xfc] sm:$0xf]
          %v1399 = vld [vmem:[#allocation11 + $0x100] sm:$0xf]
          %v1400 = vld [vmem:[#allocation11 + $0x104] sm:$0xf]
          %v1401 = vld [vmem:[#allocation11 + $0x108] sm:$0xf]
          %v1402 = vld [vmem:[#allocation11 + $0x10c] sm:$0xf]
          %v1403 = vld [vmem:[#allocation11 + $0x110] sm:$0xf]
          %v1404 = vld [vmem:[#allocation11 + $0x114] sm:$0xf]
          %v1405 = vld [vmem:[#allocation11 + $0x118] sm:$0xf]
          %v1406 = vld [vmem:[#allocation11 + $0x11c] sm:$0xf]
          %v1407 = vld [vmem:[#allocation11 + $0x120] sm:$0xf]
          %v1408 = vld [vmem:[#allocation11 + $0x124] sm:$0xf]
          %v1409 = vld [vmem:[#allocation11 + $0x128] sm:$0xf]
          %v1410 = vld [vmem:[#allocation11 + $0x12c] sm:$0xf]
          %v1411 = vld [vmem:[#allocation11 + $0x130] sm:$0xf]
          %v1412 = vld [vmem:[#allocation11 + $0x134] sm:$0xf]
          %v1413 = vld [vmem:[#allocation11 + $0x138] sm:$0xf]
          %v1414 = vld [vmem:[#allocation11 + $0x13c] sm:$0xf]
          %v1415 = vld [vmem:[#allocation11 + $0x140] sm:$0xf]
          %v1416 = vld [vmem:[#allocation11 + $0x144] sm:$0xf]
          %v1417 = vld [vmem:[#allocation11 + $0x148] sm:$0xf]
          %v1418 = vld [vmem:[#allocation11 + $0x14c] sm:$0xf]
          %v1419 = vld [vmem:[#allocation11 + $0x150] sm:$0xf]
          %v1420 = vld [vmem:[#allocation11 + $0x154] sm:$0xf]
          %v1421 = vld [vmem:[#allocation11 + $0x158] sm:$0xf]
          %v1422 = vld [vmem:[#allocation11 + $0x15c] sm:$0xf]
          %v1423 = vld [vmem:[#allocation11 + $0x160] sm:$0xf]
          %v1424 = vld [vmem:[#allocation11 + $0x164] sm:$0xf]
          %v1425 = vld [vmem:[#allocation11 + $0x168] sm:$0xf]
          %v1426 = vld [vmem:[#allocation11 + $0x16c] sm:$0xf]
          %v1427 = vld [vmem:[#allocation11 + $0x170] sm:$0xf]
          %v1428 = vld [vmem:[#allocation11 + $0x174] sm:$0xf]
          %v1429 = vld [vmem:[#allocation11 + $0x178] sm:$0xf]
          %v1430 = vld [vmem:[#allocation11 + $0x17c] sm:$0xf]
          %v1431 = vld [vmem:[#allocation11 + $0x180] sm:$0xf]
          %v1432 = vld [vmem:[#allocation11 + $0x184] sm:$0xf]
          %v1433 = vld [vmem:[#allocation11 + $0x188] sm:$0xf]
          %v1434 = vld [vmem:[#allocation11 + $0x18c] sm:$0xf]
          %v1435 = vld [vmem:[#allocation11 + $0x190] sm:$0xf]
          %v1436 = vld [vmem:[#allocation11 + $0x194] sm:$0xf]
          %v1437 = vld [vmem:[#allocation11 + $0x198] sm:$0xf]
          %v1438 = vld [vmem:[#allocation11 + $0x19c] sm:$0xf]
          %v1439 = vld [vmem:[#allocation11 + $0x1a0] sm:$0xf]
          %v1440 = vld [vmem:[#allocation11 + $0x1a4] sm:$0xf]
          %v1441 = vld [vmem:[#allocation11 + $0x1a8] sm:$0xf]
          %v1442 = vld [vmem:[#allocation11 + $0x1ac] sm:$0xf]
          %v1443 = vld [vmem:[#allocation11 + $0x1b0] sm:$0xf]
          %v1444 = vld [vmem:[#allocation11 + $0x1b4] sm:$0xf]
          %v1445 = vld [vmem:[#allocation11 + $0x1b8] sm:$0xf]
          %v1446 = vld [vmem:[#allocation11 + $0x1bc] sm:$0xf]
          %v1447 = vld [vmem:[#allocation11 + $0x1c0] sm:$0xf]
          %v1448 = vld [vmem:[#allocation11 + $0x1c4] sm:$0xf]
          %v1449 = vld [vmem:[#allocation11 + $0x1c8] sm:$0xf]
          %v1450 = vld [vmem:[#allocation11 + $0x1cc] sm:$0xf]
          %v1451 = vld [vmem:[#allocation11 + $0x1d0] sm:$0xf]
          %v1452 = vld [vmem:[#allocation11 + $0x1d4] sm:$0xf]
          %v1453 = vld [vmem:[#allocation11 + $0x1d8] sm:$0xf]
          %v1454 = vld [vmem:[#allocation11 + $0x1dc] sm:$0xf]
          %v1455 = vld [vmem:[#allocation11 + $0x1e0] sm:$0xf]
          %v1456 = vld [vmem:[#allocation11 + $0x1e4] sm:$0xf]
          %v1457 = vld [vmem:[#allocation11 + $0x1e8] sm:$0xf]
          %v1458 = vld [vmem:[#allocation11 + $0x1ec] sm:$0xf]
          %v1459 = vld [vmem:[#allocation11 + $0x1f0] sm:$0xf]
          %v1460 = vld [vmem:[#allocation11 + $0x1f4] sm:$0xf]
          %v1461 = vld [vmem:[#allocation11 + $0x1f8] sm:$0xf]
          %v1462 = vld [vmem:[#allocation11 + $0x1fc] sm:$0xf]
          %v1463 = vld [vmem:[#allocation11 + $0x200] sm:$0xf]
          %v1464 = vld [vmem:[#allocation11 + $0x204] sm:$0xf]
          %v1465 = vld [vmem:[#allocation11 + $0x208] sm:$0xf]
          %v1466 = vld [vmem:[#allocation11 + $0x20c] sm:$0xf]
          %v1467 = vld [vmem:[#allocation11 + $0x210] sm:$0xf]
          %v1468 = vld [vmem:[#allocation11 + $0x214] sm:$0xf]
          %v1469 = vld [vmem:[#allocation11 + $0x218] sm:$0xf]
          %v1470 = vld [vmem:[#allocation11 + $0x21c] sm:$0xf]
          %v1471 = vld [vmem:[#allocation11 + $0x220] sm:$0xf]
          %v1472 = vld [vmem:[#allocation11 + $0x224] sm:$0xf]
          %v1473 = vld [vmem:[#allocation11 + $0x228] sm:$0xf]
          %v1474 = vld [vmem:[#allocation11 + $0x22c] sm:$0xf]
          %v1475 = vld [vmem:[#allocation11 + $0x230] sm:$0xf]
          %v1476 = vld [vmem:[#allocation11 + $0x234] sm:$0xf]
          %v1477 = vld [vmem:[#allocation11 + $0x238] sm:$0xf]
          %v1478 = vld [vmem:[#allocation11 + $0x23c] sm:$0xf]
          %v1479 = vld [vmem:[#allocation11 + $0x240] sm:$0xf]
          %v1480 = vld [vmem:[#allocation11 + $0x244] sm:$0xf]
          %v1481 = vld [vmem:[#allocation11 + $0x248] sm:$0xf]
          %v1482 = vld [vmem:[#allocation11 + $0x24c] sm:$0xf]
          %v1483 = vld [vmem:[#allocation11 + $0x250] sm:$0xf]
          %v1484 = vld [vmem:[#allocation11 + $0x254] sm:$0xf]
          %v1485 = vld [vmem:[#allocation11 + $0x258] sm:$0xf]
          %v1486 = vld [vmem:[#allocation11 + $0x25c] sm:$0xf]
          %v1487 = vld [vmem:[%s3] sm:$0x1]
          %v1489 = vperm.slane %v1487, 0
          %v1501 = vunpack.c.l.b16 %v1325
          %v1502 = vunpack.c.h.b16 %v1325
          %v1503 = vunpack.c.l.b16 %v1326
          %v1504 = vunpack.c.h.b16 %v1326
          %v1505 = vunpack.c.l.b16 %v1327
          %v1506 = vunpack.c.h.b16 %v1327
          %v1507 = vunpack.c.l.b16 %v1328
          %v1508 = vunpack.c.h.b16 %v1328
          %v1509 = vunpack.c.l.b16 %v1329
          %v1510 = vunpack.c.h.b16 %v1329
          %v1511 = vunpack.c.l.b16 %v1330
          %v1512 = vunpack.c.h.b16 %v1330
          %v1513 = vunpack.c.l.b16 %v1331
          %v1514 = vunpack.c.h.b16 %v1331
          %v1515 = vunpack.c.l.b16 %v1332
          %v1516 = vunpack.c.h.b16 %v1332
          %v1517 = vunpack.c.l.b16 %v1333
          %v1518 = vunpack.c.h.b16 %v1333
          %v1519 = vunpack.c.l.b16 %v1334
          %v1520 = vunpack.c.h.b16 %v1334
          %v1521 = vpack.c.b16 %v1511, %v1501
          %v1522 = vpack.c.b16 %v1512, %v1502
          %v1523 = vpack.c.b16 %v1513, %v1503
          %v1524 = vpack.c.b16 %v1514, %v1504
          %v1525 = vpack.c.b16 %v1515, %v1505
          %v1526 = vpack.c.b16 %v1516, %v1506
          %v1527 = vpack.c.b16 %v1517, %v1507
          %v1528 = vpack.c.b16 %v1518, %v1508
          %v1529 = vpack.c.b16 %v1519, %v1509
          %v1530 = vpack.c.b16 %v1520, %v1510
          %v1692 = vunpack.c.l.b16 %v1335
          %v1693 = vunpack.c.l.b16 %v1336
          %v1694 = vunpack.c.l.b16 %v1337
          %v1695 = vunpack.c.l.b16 %v1338
          %v1696 = vunpack.c.l.b16 %v1339
          %v1697 = vunpack.c.l.b16 %v1340
          %v1698 = vunpack.c.l.b16 %v1341
          %v1699 = vunpack.c.l.b16 %v1342
          %v1700 = vunpack.c.l.b16 %v1343
          %v1701 = vunpack.c.l.b16 %v1344
          %v1702 = vunpack.c.l.b16 %v1345
          %v1703 = vunpack.c.l.b16 %v1346
          %v1704 = vunpack.c.l.b16 %v1347
          %v1705 = vunpack.c.l.b16 %v1348
          %v1706 = vunpack.c.l.b16 %v1349
          %v1707 = vunpack.c.l.b16 %v1350
          %v1708 = vunpack.c.l.b16 %v1351
          %v1709 = vunpack.c.l.b16 %v1352
          %v1710 = vunpack.c.l.b16 %v1353
          %v1711 = vunpack.c.l.b16 %v1354
          %v1712 = vunpack.c.l.b16 %v1355
          %v1713 = vunpack.c.l.b16 %v1356
          %v1714 = vunpack.c.l.b16 %v1357
          %v1715 = vunpack.c.l.b16 %v1358
          %v1716 = vunpack.c.l.b16 %v1359
          %v1717 = vunpack.c.l.b16 %v1360
          %v1718 = vunpack.c.l.b16 %v1361
          %v1719 = vunpack.c.l.b16 %v1362
          %v1720 = vunpack.c.l.b16 %v1363
          %v1721 = vunpack.c.l.b16 %v1364
          %v1722 = vunpack.c.l.b16 %v1365
          %v1723 = vunpack.c.l.b16 %v1366
          %v1724 = vunpack.c.l.b16 %v1367
          %v1725 = vunpack.c.l.b16 %v1368
          %v1726 = vunpack.c.l.b16 %v1369
          %v1727 = vunpack.c.l.b16 %v1370
          %v1728 = vunpack.c.l.b16 %v1371
          %v1729 = vunpack.c.l.b16 %v1372
          %v1730 = vunpack.c.l.b16 %v1373
          %v1731 = vunpack.c.l.b16 %v1374
          %v1732 = vunpack.c.l.b16 %v1375
          %v1733 = vunpack.c.l.b16 %v1376
          %v1734 = vunpack.c.l.b16 %v1377
          %v1735 = vunpack.c.l.b16 %v1378
          %v1736 = vunpack.c.l.b16 %v1379
          %v1737 = vunpack.c.l.b16 %v1380
          %v1738 = vunpack.c.l.b16 %v1381
          %v1739 = vunpack.c.l.b16 %v1382
          %v1740 = vunpack.c.l.b16 %v1383
          %v1741 = vunpack.c.l.b16 %v1384
          %v1742 = vunpack.c.l.b16 %v1385
          %v1743 = vunpack.c.l.b16 %v1386
          %v1744 = vunpack.c.l.b16 %v1387
          %v1745 = vunpack.c.l.b16 %v1388
          %v1746 = vunpack.c.l.b16 %v1389
          %v1747 = vunpack.c.l.b16 %v1390
          %v1748 = vunpack.c.l.b16 %v1391
          %v1749 = vunpack.c.l.b16 %v1392
          %v1750 = vunpack.c.l.b16 %v1393
          %v1751 = vunpack.c.l.b16 %v1394
          %v1752 = vunpack.c.l.b16 %v1395
          %v1753 = vunpack.c.l.b16 %v1396
          %v1754 = vunpack.c.l.b16 %v1397
          %v1755 = vunpack.c.l.b16 %v1398
          %v1756 = vunpack.c.l.b16 %v1399
          %v1757 = vunpack.c.l.b16 %v1400
          %v1758 = vunpack.c.l.b16 %v1401
          %v1759 = vunpack.c.l.b16 %v1402
          %v1760 = vunpack.c.l.b16 %v1403
          %v1761 = vunpack.c.l.b16 %v1404
          %v1762 = vunpack.c.l.b16 %v1405
          %v1763 = vunpack.c.l.b16 %v1406
          %v1764 = vunpack.c.l.b16 %v1407
          %v1765 = vunpack.c.l.b16 %v1408
          %v1766 = vunpack.c.l.b16 %v1409
          %v1767 = vunpack.c.l.b16 %v1410
          %v1768 = vunpack.c.l.b16 %v1411
          %v1769 = vunpack.c.l.b16 %v1412
          %v1770 = vunpack.c.l.b16 %v1413
          %v1771 = vunpack.c.l.b16 %v1414
          %v1772 = vunpack.c.l.b16 %v1415
          %v1773 = vunpack.c.l.b16 %v1416
          %v1774 = vunpack.c.l.b16 %v1417
          %v1775 = vunpack.c.l.b16 %v1418
          %v1776 = vunpack.c.l.b16 %v1419
          %v1777 = vunpack.c.l.b16 %v1420
          %v1778 = vunpack.c.l.b16 %v1421
          %v1779 = vunpack.c.l.b16 %v1422
          %v1780 = vunpack.c.l.b16 %v1423
          %v1781 = vunpack.c.l.b16 %v1424
          %v1782 = vunpack.c.l.b16 %v1425
          %v1783 = vunpack.c.l.b16 %v1426
          %v1784 = vunpack.c.l.b16 %v1427
          %v1785 = vunpack.c.l.b16 %v1428
          %v1786 = vunpack.c.l.b16 %v1429
          %v1787 = vunpack.c.l.b16 %v1430
          %v1788 = vunpack.c.l.b16 %v1431
          %v1789 = vunpack.c.l.b16 %v1432
          %v1790 = vunpack.c.l.b16 %v1433
          %v1791 = vunpack.c.l.b16 %v1434
          %v1792 = vunpack.c.l.b16 %v1435
          %v1793 = vunpack.c.l.b16 %v1436
          %v1794 = vunpack.c.l.b16 %v1437
          %v1795 = vunpack.c.l.b16 %v1438
          %v1796 = vunpack.c.l.b16 %v1439
          %v1797 = vunpack.c.l.b16 %v1440
          %v1798 = vunpack.c.l.b16 %v1441
          %v1799 = vunpack.c.l.b16 %v1442
          %v1800 = vunpack.c.l.b16 %v1443
          %v1801 = vunpack.c.l.b16 %v1444
          %v1802 = vunpack.c.l.b16 %v1445
          %v1803 = vunpack.c.l.b16 %v1446
          %v1804 = vunpack.c.l.b16 %v1447
          %v1805 = vunpack.c.l.b16 %v1448
          %v1806 = vunpack.c.l.b16 %v1449
          %v1807 = vunpack.c.l.b16 %v1450
          %v1808 = vunpack.c.l.b16 %v1451
          %v1809 = vunpack.c.l.b16 %v1452
          %v1810 = vunpack.c.l.b16 %v1453
          %v1811 = vunpack.c.l.b16 %v1454
          %v1812 = vunpack.c.l.b16 %v1455
          %v1813 = vunpack.c.l.b16 %v1456
          %v1814 = vunpack.c.l.b16 %v1457
          %v1815 = vunpack.c.l.b16 %v1458
          %v1816 = vunpack.c.l.b16 %v1459
          %v1817 = vunpack.c.l.b16 %v1460
          %v1818 = vunpack.c.l.b16 %v1461
          %v1819 = vunpack.c.l.b16 %v1462
          %v1820 = vunpack.c.l.b16 %v1463
          %v1821 = vunpack.c.l.b16 %v1464
          %v1822 = vunpack.c.l.b16 %v1465
          %v1823 = vunpack.c.l.b16 %v1466
          %v1824 = vunpack.c.l.b16 %v1467
          %v1825 = vunpack.c.l.b16 %v1468
          %v1826 = vunpack.c.l.b16 %v1469
          %v1827 = vunpack.c.l.b16 %v1470
          %v1828 = vunpack.c.l.b16 %v1471
          %v1829 = vunpack.c.l.b16 %v1472
          %v1830 = vunpack.c.l.b16 %v1473
          %v1831 = vunpack.c.l.b16 %v1474
          %v1832 = vunpack.c.l.b16 %v1475
          %v1833 = vunpack.c.l.b16 %v1476
          %v1834 = vunpack.c.l.b16 %v1477
          %v1835 = vunpack.c.l.b16 %v1478
          %v1836 = vunpack.c.l.b16 %v1479
          %v1837 = vunpack.c.l.b16 %v1480
          %v1838 = vunpack.c.l.b16 %v1481
          %v1839 = vunpack.c.l.b16 %v1482
          %v1840 = vunpack.c.l.b16 %v1483
          %v1841 = vunpack.c.l.b16 %v1484
          %v1842 = vunpack.c.l.b16 %v1485
          %v1843 = vunpack.c.l.b16 %v1486
          %v1844 = vpack.c.b16 %v1693, %v1692
          %v1845 = vpack.c.b16 %v1695, %v1694
          %v1846 = vpack.c.b16 %v1697, %v1696
          %v1847 = vpack.c.b16 %v1699, %v1698
          %v1848 = vpack.c.b16 %v1701, %v1700
          %v1849 = vpack.c.b16 %v1703, %v1702
          %v1850 = vpack.c.b16 %v1705, %v1704
          %v1851 = vpack.c.b16 %v1707, %v1706
          %v1852 = vpack.c.b16 %v1709, %v1708
          %v1853 = vpack.c.b16 %v1711, %v1710
          %v1854 = vpack.c.b16 %v1713, %v1712
          %v1855 = vpack.c.b16 %v1715, %v1714
          %v1856 = vpack.c.b16 %v1717, %v1716
          %v1857 = vpack.c.b16 %v1719, %v1718
          %v1858 = vpack.c.b16 %v1721, %v1720
          %v1859 = vpack.c.b16 %v1723, %v1722
          %v1860 = vpack.c.b16 %v1725, %v1724
          %v1861 = vpack.c.b16 %v1727, %v1726
          %v1862 = vpack.c.b16 %v1729, %v1728
          %v1863 = vpack.c.b16 %v1731, %v1730
          %v1864 = vpack.c.b16 %v1733, %v1732
          %v1865 = vpack.c.b16 %v1735, %v1734
          %v1866 = vpack.c.b16 %v1737, %v1736
          %v1867 = vpack.c.b16 %v1739, %v1738
          %v1868 = vpack.c.b16 %v1741, %v1740
          %v1869 = vpack.c.b16 %v1743, %v1742
          %v1870 = vpack.c.b16 %v1745, %v1744
          %v1871 = vpack.c.b16 %v1747, %v1746
          %v1872 = vpack.c.b16 %v1749, %v1748
          %v1873 = vpack.c.b16 %v1751, %v1750
          %v1874 = vpack.c.b16 %v1753, %v1752
          %v1875 = vpack.c.b16 %v1755, %v1754
          %v1876 = vpack.c.b16 %v1757, %v1756
          %v1877 = vpack.c.b16 %v1759, %v1758
          %v1878 = vpack.c.b16 %v1761, %v1760
          %v1879 = vpack.c.b16 %v1763, %v1762
          %v1880 = vpack.c.b16 %v1765, %v1764
          %v1881 = vpack.c.b16 %v1767, %v1766
          %v1882 = vpack.c.b16 %v1769, %v1768
          %v1883 = vpack.c.b16 %v1771, %v1770
          %v1884 = vpack.c.b16 %v1773, %v1772
          %v1885 = vpack.c.b16 %v1775, %v1774
          %v1886 = vpack.c.b16 %v1777, %v1776
          %v1887 = vpack.c.b16 %v1779, %v1778
          %v1888 = vpack.c.b16 %v1781, %v1780
          %v1889 = vpack.c.b16 %v1783, %v1782
          %v1890 = vpack.c.b16 %v1785, %v1784
          %v1891 = vpack.c.b16 %v1787, %v1786
          %v1892 = vpack.c.b16 %v1789, %v1788
          %v1893 = vpack.c.b16 %v1791, %v1790
          %v1894 = vpack.c.b16 %v1793, %v1792
          %v1895 = vpack.c.b16 %v1795, %v1794
          %v1896 = vpack.c.b16 %v1797, %v1796
          %v1897 = vpack.c.b16 %v1799, %v1798
          %v1898 = vpack.c.b16 %v1801, %v1800
          %v1899 = vpack.c.b16 %v1803, %v1802
          %v1900 = vpack.c.b16 %v1805, %v1804
          %v1901 = vpack.c.b16 %v1807, %v1806
          %v1902 = vpack.c.b16 %v1809, %v1808
          %v1903 = vpack.c.b16 %v1811, %v1810
          %v1904 = vpack.c.b16 %v1813, %v1812
          %v1905 = vpack.c.b16 %v1815, %v1814
          %v1906 = vpack.c.b16 %v1817, %v1816
          %v1907 = vpack.c.b16 %v1819, %v1818
          %v1908 = vpack.c.b16 %v1821, %v1820
          %v1909 = vpack.c.b16 %v1823, %v1822
          %v1910 = vpack.c.b16 %v1825, %v1824
          %v1911 = vpack.c.b16 %v1827, %v1826
          %v1912 = vpack.c.b16 %v1829, %v1828
          %v1913 = vpack.c.b16 %v1831, %v1830
          %v1914 = vpack.c.b16 %v1833, %v1832
          %v1915 = vpack.c.b16 %v1835, %v1834
          %v1916 = vpack.c.b16 %v1837, %v1836
          %v1917 = vpack.c.b16 %v1839, %v1838
          %v1918 = vpack.c.b16 %v1841, %v1840
          %v1919 = vpack.c.b16 %v1843, %v1842
          %vm1996 = vcmask 523264
          %v1998 = vsel %vm1996, %v1530, 0
          %2000 = vmatpush.bf16.msra.mxu0 %v1851
          %2001 = vmatpush.bf16.msra.mxu0 %v1850
          %2002 = vmatpush.bf16.msra.mxu0 %v1849
          %2003 = vmatpush.bf16.msra.mxu0 %v1848
          %2004 = vmatpush.bf16.msra.mxu0 %v1847
          %2005 = vmatpush.bf16.msra.mxu0 %v1846
          %2006 = vmatpush.bf16.msra.mxu0 %v1845
          %2007 = vmatpush.bf16.msra.mxu0 %v1844
          %2008 = vmatmul.bf16.gmra.mxu0 %v1521
          %v2009 = vpop.f32.mrf.mxu0
          %v2010 = vadd.f32 %v1489, %v2009
          %v2011 = vpop.f32.mrf.mxu0
          %v2012 = vadd.f32 %v1489, %v2011
          %2013 = vdwg.mxu0
          %2014 = vmatpush.bf16.msra.mxu0 %v1859
          %2015 = vmatpush.bf16.msra.mxu0 %v1858
          %2016 = vmatpush.bf16.msra.mxu0 %v1857
          %2017 = vmatpush.bf16.msra.mxu0 %v1856
          %2018 = vmatpush.bf16.msra.mxu0 %v1855
          %2019 = vmatpush.bf16.msra.mxu0 %v1854
          %2020 = vmatpush.bf16.msra.mxu0 %v1853
          %2021 = vmatpush.bf16.msra.mxu0 %v1852
          %2022 = vmatmul.bf16.gmra.mxu0 %v1522
          %v2023 = vpop.f32.mrf.mxu0
          %v2024 = vadd.f32 %v2010, %v2023
          %v2025 = vpop.f32.mrf.mxu0
          %v2026 = vadd.f32 %v2012, %v2025
          %2027 = vdwg.mxu0
          %2028 = vmatpush.bf16.msra.mxu0 %v1867
          %2029 = vmatpush.bf16.msra.mxu0 %v1866
          %2030 = vmatpush.bf16.msra.mxu0 %v1865
          %2031 = vmatpush.bf16.msra.mxu0 %v1864
          %2032 = vmatpush.bf16.msra.mxu0 %v1863
          %2033 = vmatpush.bf16.msra.mxu0 %v1862
          %2034 = vmatpush.bf16.msra.mxu0 %v1861
          %2035 = vmatpush.bf16.msra.mxu0 %v1860
          %2036 = vmatmul.bf16.gmra.mxu0 %v1523
          %v2037 = vpop.f32.mrf.mxu0
          %v2038 = vadd.f32 %v2024, %v2037
          %v2039 = vpop.f32.mrf.mxu0
          %v2040 = vadd.f32 %v2026, %v2039
          %2041 = vdwg.mxu0
          %2042 = vmatpush.bf16.msra.mxu0 %v1875
          %2043 = vmatpush.bf16.msra.mxu0 %v1874
          %2044 = vmatpush.bf16.msra.mxu0 %v1873
          %2045 = vmatpush.bf16.msra.mxu0 %v1872
          %2046 = vmatpush.bf16.msra.mxu0 %v1871
          %2047 = vmatpush.bf16.msra.mxu0 %v1870
          %2048 = vmatpush.bf16.msra.mxu0 %v1869
          %2049 = vmatpush.bf16.msra.mxu0 %v1868
          %2050 = vmatmul.bf16.gmra.mxu0 %v1524
          %v2051 = vpop.f32.mrf.mxu0
          %v2052 = vadd.f32 %v2038, %v2051
          %v2053 = vpop.f32.mrf.mxu0
          %v2054 = vadd.f32 %v2040, %v2053
          %2055 = vdwg.mxu0
          %2056 = vmatpush.bf16.msra.mxu0 %v1883
          %2057 = vmatpush.bf16.msra.mxu0 %v1882
          %2058 = vmatpush.bf16.msra.mxu0 %v1881
          %2059 = vmatpush.bf16.msra.mxu0 %v1880
          %2060 = vmatpush.bf16.msra.mxu0 %v1879
          %2061 = vmatpush.bf16.msra.mxu0 %v1878
          %2062 = vmatpush.bf16.msra.mxu0 %v1877
          %2063 = vmatpush.bf16.msra.mxu0 %v1876
          %2064 = vmatmul.bf16.gmra.mxu0 %v1525
          %v2065 = vpop.f32.mrf.mxu0
          %v2066 = vadd.f32 %v2052, %v2065
          %v2067 = vpop.f32.mrf.mxu0
          %v2068 = vadd.f32 %v2054, %v2067
          %2069 = vdwg.mxu0
          %2070 = vmatpush.bf16.msra.mxu0 %v1891
          %2071 = vmatpush.bf16.msra.mxu0 %v1890
          %2072 = vmatpush.bf16.msra.mxu0 %v1889
          %2073 = vmatpush.bf16.msra.mxu0 %v1888
          %2074 = vmatpush.bf16.msra.mxu0 %v1887
          %2075 = vmatpush.bf16.msra.mxu0 %v1886
          %2076 = vmatpush.bf16.msra.mxu0 %v1885
          %2077 = vmatpush.bf16.msra.mxu0 %v1884
          %2078 = vmatmul.bf16.gmra.mxu0 %v1526
          %v2079 = vpop.f32.mrf.mxu0
          %v2080 = vadd.f32 %v2066, %v2079
          %v2081 = vpop.f32.mrf.mxu0
          %v2082 = vadd.f32 %v2068, %v2081
          %2083 = vdwg.mxu0
          %2084 = vmatpush.bf16.msra.mxu0 %v1899
          %2085 = vmatpush.bf16.msra.mxu0 %v1898
          %2086 = vmatpush.bf16.msra.mxu0 %v1897
          %2087 = vmatpush.bf16.msra.mxu0 %v1896
          %2088 = vmatpush.bf16.msra.mxu0 %v1895
          %2089 = vmatpush.bf16.msra.mxu0 %v1894
          %2090 = vmatpush.bf16.msra.mxu0 %v1893
          %2091 = vmatpush.bf16.msra.mxu0 %v1892
          %2092 = vmatmul.bf16.gmra.mxu0 %v1527
          %v2093 = vpop.f32.mrf.mxu0
          %v2094 = vadd.f32 %v2080, %v2093
          %v2095 = vpop.f32.mrf.mxu0
          %v2096 = vadd.f32 %v2082, %v2095
          %2097 = vdwg.mxu0
          %2098 = vmatpush.bf16.msra.mxu0 %v1907
          %2099 = vmatpush.bf16.msra.mxu0 %v1906
          %2100 = vmatpush.bf16.msra.mxu0 %v1905
          %2101 = vmatpush.bf16.msra.mxu0 %v1904
          %2102 = vmatpush.bf16.msra.mxu0 %v1903
          %2103 = vmatpush.bf16.msra.mxu0 %v1902
          %2104 = vmatpush.bf16.msra.mxu0 %v1901
          %2105 = vmatpush.bf16.msra.mxu0 %v1900
          %2106 = vmatmul.bf16.gmra.mxu0 %v1528
          %v2107 = vpop.f32.mrf.mxu0
          %v2108 = vadd.f32 %v2094, %v2107
          %v2109 = vpop.f32.mrf.mxu0
          %v2110 = vadd.f32 %v2096, %v2109
          %2111 = vdwg.mxu0
          %2112 = vmatpush.bf16.msra.mxu0 %v1915
          %2113 = vmatpush.bf16.msra.mxu0 %v1914
          %2114 = vmatpush.bf16.msra.mxu0 %v1913
          %2115 = vmatpush.bf16.msra.mxu0 %v1912
          %2116 = vmatpush.bf16.msra.mxu0 %v1911
          %2117 = vmatpush.bf16.msra.mxu0 %v1910
          %2118 = vmatpush.bf16.msra.mxu0 %v1909
          %2119 = vmatpush.bf16.msra.mxu0 %v1908
          %2120 = vmatmul.bf16.gmra.mxu0 %v1529
          %v2121 = vpop.f32.mrf.mxu0
          %v2122 = vadd.f32 %v2108, %v2121
          %v2123 = vpop.f32.mrf.mxu0
          %v2124 = vadd.f32 %v2110, %v2123
          %2125 = vdwg.mxu0
          %2126 = vmatpush.bf16.msra.mxu0 0
          %2127 = vmatpush.bf16.msra.mxu0 0
          %2128 = vmatpush.bf16.msra.mxu0 0
          %2129 = vmatpush.bf16.msra.mxu0 0
          %2130 = vmatpush.bf16.msra.mxu0 %v1919
          %2131 = vmatpush.bf16.msra.mxu0 %v1918
          %2132 = vmatpush.bf16.msra.mxu0 %v1917
          %2133 = vmatpush.bf16.msra.mxu0 %v1916
          %2134 = vmatmul.bf16.gmra.mxu0 %v1998
          %v2135 = vpop.f32.mrf.mxu0
          %v2136 = vadd.f32 %v2122, %v2135
          %v2137 = vpop.f32.mrf.mxu0
          %v2138 = vadd.f32 %v2124, %v2137
          %2139 = vdwg.mxu0
          %v2140 = vmax.f32 %v2136, 0.0
          %v2141 = vmax.f32 %v2138, 0.0
          %2142 = vst [vmem:[%s346] sm:$0xff] %v2140
          %2143 = vst [vmem:[%s346 + $0x8] sm:$0xff] %v2141
        $region72: #{tpu_custom_call.1} parent=51 // pred_fallthru
          _
        %s2144 = sand.u32 %s219, 1
        %s2145 = scalar_lea.sflag [#allocation10], %s2144
        %s2146 = sand.u32 %s219, 1
        %s2147 = smul.addr %s2146, 16
        %s2148 = scalar_lea.vmem [#allocation13], %s2147
        // Predicated region
        $region73: #{tpu_custom_call.1} parent=51 // pred_check
          %p2149 = pneg %p229
        $region74: #{tpu_custom_call.1} parent=51 // pred_check_branch
          %2151 = sbr.rel (%p2149) target = $region76
        $region75: #{tpu_custom_call.1} parent=51 // pred_region
          %s2152 = smul.u32 %s28, %s29
          %2154 = vsyncadd %s2145, 0
          %s2155 = smul.addr %s2152, 2
          %s2156 = smul.addr %s2155, 8
          %s2157 = scalar_lea.hbm %s8, %s2156
          %s2158 = sshll.u32 %s2148, 4
          %s2159 = int_to_ptr.vmem [resolvable:$true] %s2158
          %s2160 = sshll.u32 %s2157, 4
          %s2161 = int_to_ptr.hbm [resolvable:$true] %s2160
          %2166 = dma.vmem_to_hbm [thread:$0]  %s2159, 256, %s2161, %s2145, 128, 128, 8
        $region76: #{tpu_custom_call.1} parent=51 // pred_fallthru
          _
      $region52: #{tpu_custom_call.1} parent=5 // pred_fallthru
        _
      %p2167 = scmp.le.s32.totalorder 2, %s19
      // Predicated region
      $region77: #{tpu_custom_call.1} parent=5 // pred_check
        %p2168 = pneg %p2167
      $region78: #{tpu_custom_call.1} parent=5 // pred_check_branch
        %2170 = sbr.rel (%p2168) target = $region80
      $region79: #{tpu_custom_call.1} parent=5 // pred_region
        %s2171 = ssub.s32 %s19, 2
        // Predicated region
        $region81: #{tpu_custom_call.1} parent=79 // pred_check
          %p2172 = pneg %p235
        $region82: #{tpu_custom_call.1} parent=79 // pred_check_branch
          %2174 = sbr.rel (%p2172) target = $region84
        $region83: #{tpu_custom_call.1} parent=79 // pred_region
          %s2175 = sand.u32 %s220, 1
          %s2176 = scalar_lea.sflag [#allocation10], %s2175
          %s2177 = sand.u32 %s220, 1
          %s2178 = smul.addr %s2177, 16
          %s2179 = scalar_lea.vmem [#allocation13], %s2178
          %2181 = dma.done %s2176, 256
        $region84: #{tpu_custom_call.1} parent=79 // pred_fallthru
          _
      $region80: #{tpu_custom_call.1} parent=5 // pred_fallthru
        _
    $region6: #{tpu_custom_call.1} parent=1 // loop_footer
      %s23 = sadd.s32 1, %s19
    $region7: #{tpu_custom_call.1} parent=1 // loop_footer_branch
      %18 = sbr.rel target = $region3
    $region8: #{tpu_custom_call.1} parent=1 // loop_exit
      _
    %2182 = vsyncpa [#allocation9], 1
    %s2183 = scalar_lea.sflag [#allocation9], 1
    %2184 = vsyncpa %s2183, 1
    %2185 = vsyncpa [#allocation12], 1
    %2186 = vsyncpa [#allocation10], 1
    %s2187 = scalar_lea.sflag [#allocation10], 1
    %2188 = vsyncpa %s2187, 1

</llo_original>
